<compile_context>
chip_gen: v7x
topology: tpu7x:2x2x1
jax: 0.10.0
libtpu: 0.0.40
codegen_flags: <defaults>
</compile_context>

<pallas_src>
import functools

import jax
import jax.numpy as jnp
from jax import lax
from jax.experimental import pallas as pl
from jax.experimental.pallas import tpu as pltpu

LANE = 128


def _gelu_tanh(x):
    # tanh-approx GELU (VPU + EUP). GELU(0) == 0 exactly, so zero-padded hidden
    # lanes of h stay exactly 0 and the mask-free LayerNorm stats are correct.
    # TODO(synk): HF Wav2Vec2 uses exact erf-GELU; tanh approx differs ~1e-3.
    c = 0.7978845608028654  # sqrt(2/pi)
    return 0.5 * x * (1.0 + jnp.tanh(c * (x + 0.044715 * x * x * x)))


def w2v_head_kernel(frames_ref, wc_ref, wlm_ref, blm_ref, out_ref, *,
                    hidden_true):
    """Fused conv-as-matmul -> GELU -> LayerNorm -> (LN-affine-folded) lm_head.

    frames_ref: (row_tile, K)     f32  im2col frames (true K, no lane padding)
    wc_ref:     (K, H_pad)        bf16 conv weight (zero-padded hidden columns)
    wlm_ref:    (H_pad, V_pad)    bf16 lm_head weight with LN gamma folded in
                                       (zero-padded on both axes)
    blm_ref:    (1, V_pad)        f32  lm_head bias with LN beta folded in
    out_ref:    (row_tile, V_pad)      logits tile (lane dense)
    """
    # Feature extraction on the MXU: bf16 x bf16 -> f32 accumulate.
    x = frames_ref[...].astype(jnp.bfloat16)
    h = jnp.dot(x, wc_ref[...], preferred_element_type=jnp.float32)
    h = _gelu_tanh(h)

    # Mask-free LayerNorm over the TRUE hidden width: the H_pad - H padded
    # lanes of h are exactly 0, so padded-axis sums equal real-lane sums.
    # One pass gives mean and E[x^2] (halves XLU reduction traffic).
    inv_h = 1.0 / float(hidden_true)
    s1 = jnp.sum(h, axis=-1, keepdims=True)
    s2 = jnp.sum(h * h, axis=-1, keepdims=True)
    mean = s1 * inv_h
    var = jnp.maximum(s2 * inv_h - mean * mean, 0.0)   # guard fp cancellation
    x_hat = (h - mean) * lax.rsqrt(var + 1e-5)

    # lm_head (gamma/beta already folded into wlm/blm by the wrapper).  Padded
    # hidden lanes of x_hat are nonzero (-mean/std) but the corresponding rows
    # of wlm are exactly zero, so they contribute nothing.
    logits = (jnp.dot(x_hat.astype(jnp.bfloat16), wlm_ref[...],
                      preferred_element_type=jnp.float32)
              + blm_ref[...])
    out_ref[...] = logits.astype(out_ref.dtype)


def _pad_axis(x, axis, target):
    pad = target - x.shape[axis]
    if pad <= 0:
        return x
    widths = [(0, 0)] * x.ndim
    widths[axis] = (0, pad)
    return jnp.pad(x, widths)


def _num_row_tiles_for_device():
    # Single-TensorCore chips (v5e / v6e): one grid step (kills per-step
    # overhead; whole problem fits VMEM).  Dual-TC chips (v7x, megacore) or
    # unknown: two steps so the "parallel" grid axis shards rows across cores.
    try:
        kind = jax.devices()[0].device_kind.lower()
    except Exception:
        return 2
    single_tc = any(t in kind for t in
                    ("v5e", "v5 lite", "v5lite", "v6e", "v6 lite", "v6lite"))
    return 1 if single_tc else 2


def custom_wav2vec2_forward(input_values, params, *, kernel_size, stride,
                            num_row_tiles=None, out_dtype=jnp.float32):
    """JAX wrapper: cheap framing + weight prep (LN fold, lane pad) + pallas_call."""
    B, T = input_values.shape
    K, S = kernel_size, stride
    L = (T - K) // S + 1                      # output sequence length
    H = params["wc"].shape[1]
    V = params["wlm"].shape[1]

    H_pad = pl.cdiv(H, LANE) * LANE
    V_pad = pl.cdiv(V, LANE) * LANE

    if num_row_tiles is None:
        num_row_tiles = _num_row_tiles_for_device()

    rows = B * L
    row_tile = pl.cdiv(pl.cdiv(rows, num_row_tiles), 8) * 8
    rows_pad = row_tile * num_row_tiles

    # Framing (im2col) kept at the TRUE kernel width K (no zero-pad to 128):
    # K equals the full last dim of the array so the BlockSpec is legal, and
    # the kernel's HBM read of frames shrinks ~8x vs a K_pad=128 layout.
    idx = (jnp.arange(L, dtype=jnp.int32)[:, None] * S
           + jnp.arange(K, dtype=jnp.int32)[None, :])          # (L, K)
    frames = jnp.take(input_values, idx, axis=1).reshape(rows, K)
    frames = jnp.pad(frames, ((0, rows_pad - rows), (0, 0))).astype(jnp.float32)

    # Zero-padded hidden columns are REQUIRED for the mask-free LayerNorm: any
    # future weight-loading path must keep padded wc columns exactly zero.
    wc = _pad_axis(params["wc"], 1, H_pad).astype(jnp.bfloat16)

    # Fold the LayerNorm affine into the lm_head:
    #   (x_hat * gamma + beta) @ W + b == x_hat @ (gamma^T * W) + (beta @ W + b)
    gamma = params["gamma"].astype(jnp.float32)                 # (1, H)
    beta = params["beta"].astype(jnp.float32)                   # (1, H)
    wlm32 = params["wlm"].astype(jnp.float32)                   # (H, V)
    wlm_f = gamma.reshape(H, 1) * wlm32
    blm_f = beta @ wlm32 + params["blm"].astype(jnp.float32)    # (1, V)
    wlm_f = _pad_axis(_pad_axis(wlm_f, 0, H_pad), 1, V_pad).astype(jnp.bfloat16)
    blm_f = _pad_axis(blm_f, 1, V_pad).astype(jnp.float32)

    grid = (num_row_tiles,)
    kernel = functools.partial(w2v_head_kernel, hidden_true=H)

    out_isize = jnp.dtype(out_dtype).itemsize
    flops = 2 * rows_pad * (K * H_pad + H_pad * V_pad)
    bytes_accessed = (frames.size * 4 + wc.size * 2 + wlm_f.size * 2
                      + blm_f.size * 4 + rows_pad * V_pad * out_isize)
    cost = pl.CostEstimate(flops=flops,
                           transcendentals=rows_pad * (H_pad + 1),
                           bytes_accessed=bytes_accessed)

    logits_pad = pl.pallas_call(
        kernel,
        out_shape=jax.ShapeDtypeStruct((rows_pad, V_pad), out_dtype),
        grid_spec=pltpu.PrefetchScalarGridSpec(
            num_scalar_prefetch=0,
            grid=grid,
            in_specs=[
                pl.BlockSpec((row_tile, K), lambda i: (i, 0)),   # frames
                pl.BlockSpec((K, H_pad), lambda i: (0, 0)),      # conv W
                pl.BlockSpec((H_pad, V_pad), lambda i: (0, 0)),  # folded lm W
                pl.BlockSpec((1, V_pad), lambda i: (0, 0)),      # folded lm b
            ],
            out_specs=pl.BlockSpec((row_tile, V_pad), lambda i: (i, 0)),
        ),
        compiler_params=pltpu.CompilerParams(
            dimension_semantics=("parallel",)),
        cost_estimate=cost,
    )(frames, wc, wlm_f, blm_f)

    # Slice off row / vocab padding and restore (B, L, V).
    return logits_pad[:rows, :V].reshape(B, L, V)


def init_params(key, kernel_size, hidden_size, vocab_size):
    """Deterministic synthetic weights (shapes follow the module's __init__)."""
    k1, k2, k3, k4, k5 = jax.random.split(key, 5)
    wc = jax.random.normal(k1, (kernel_size, hidden_size), jnp.float32) * 0.1
    # Non-trivial LN affine so the gamma/beta -> lm_head fold is actually tested.
    gamma = 1.0 + 0.1 * jax.random.normal(k4, (1, hidden_size), jnp.float32)
    beta = 0.05 * jax.random.normal(k5, (1, hidden_size), jnp.float32)
    # lm_head = nn.Linear(hidden_size, vocab_size)
    wlm = jax.random.normal(k2, (hidden_size, vocab_size), jnp.float32) * 0.1
    blm = jax.random.normal(k3, (1, vocab_size), jnp.float32) * 0.01
    return {"wc": wc, "gamma": gamma, "beta": beta, "wlm": wlm, "blm": blm}


if __name__ == "__main__":
    # batch=2 raw-audio clips; conv kernel=16, stride=8 -> L=512 frames/clip,
    # hidden=32, vocab=48.  B*L = 1024 rows -> 1 grid step (v5e/v6e) or 2
    # parallel 512-row steps (dual-TC chips).
    B, T = 2, 4104
    KERNEL, STRIDE = 16, 8
    HIDDEN, VOCAB = 32, 48

    key = jax.random.PRNGKey(0)
    kx, kp = jax.random.split(key)
    input_values = jax.random.normal(kx, (B, T), jnp.float32)
    params = init_params(kp, KERNEL, HIDDEN, VOCAB)

    logits = custom_wav2vec2_forward(
        input_values, params, kernel_size=KERNEL, stride=STRIDE)
    jax.block_until_ready(logits)

    # Pure-JAX reference of the same synthetic forward, UN-fused and with the
    # LayerNorm affine NOT folded (mirrors the bf16 casts at the matmul sites).
    L = (T - KERNEL) // STRIDE + 1
    idx = (jnp.arange(L, dtype=jnp.int32)[:, None] * STRIDE
           + jnp.arange(KERNEL, dtype=jnp.int32)[None, :])
    frames = jnp.take(input_values, idx, axis=1).reshape(B * L, KERNEL)
    h = jnp.dot(frames.astype(jnp.bfloat16),
                params["wc"].astype(jnp.bfloat16),
                preferred_element_type=jnp.float32)
    h = _gelu_tanh(h)
    mu = h.mean(-1, keepdims=True)
    var = ((h - mu) ** 2).mean(-1, keepdims=True)
    hn = (h - mu) * lax.rsqrt(var + 1e-5) * params["gamma"] + params["beta"]
    ref = (jnp.dot(hn.astype(jnp.bfloat16),
                   params["wlm"].astype(jnp.bfloat16),
                   preferred_element_type=jnp.float32)
           + params["blm"]).reshape(B, L, VOCAB)

    assert logits.shape == (B, L, VOCAB)
    max_err = float(jnp.max(jnp.abs(logits - ref)))
    assert jnp.allclose(logits, ref, atol=2e-2, rtol=2e-2), max_err

    # TODO(synk): the full pretrained Wav2Vec2 transformer encoder stack is an
    # opaque injected dependency in the PyTorch module; a minimal synthetic
    # conv-feature-extractor backbone is used in its place.
    print("KERNEL_OK")
</pallas_src>

<mosaic_0001>
module attributes {stable_mosaic.version = 11 : i64} {
  func.func @w2v_head_kernel(%arg0: i32, %arg1: memref<512x16xf32, #tpu.memory_space<vmem>>, %arg2: memref<16x128xbf16, #tpu.memory_space<vmem>>, %arg3: memref<128x128xbf16, #tpu.memory_space<vmem>>, %arg4: memref<1x128xf32, #tpu.memory_space<vmem>>, %arg5: memref<512x128xf32, #tpu.memory_space<vmem>>) attributes {dimension_semantics = [#tpu.dimension_semantics<parallel>], iteration_bounds = array<i64: 2>, scalar_prefetch = 0 : i64, scratch_operands = 0 : i64, tpu.core_type = #tpu.core_type<tc>, window_params = [{transform_indices = @transform_0, window_bounds = array<i64: 512, 16>}, {pipeline_mode = #tpu.pipeline_mode<synchronous>, transform_indices = @transform_1, window_bounds = array<i64: 16, 128>}, {pipeline_mode = #tpu.pipeline_mode<synchronous>, transform_indices = @transform_2, window_bounds = array<i64: 128, 128>}, {pipeline_mode = #tpu.pipeline_mode<synchronous>, transform_indices = @transform_3, window_bounds = array<i64: 1, 128>}, {transform_indices = @transform_4, window_bounds = array<i64: 512, 128>}]} {
    %c0 = arith.constant 0 : index
    %c0_0 = arith.constant 0 : index
    %0 = vector.load %arg1[%c0, %c0_0] : memref<512x16xf32, #tpu.memory_space<vmem>>, vector<512x16xf32>
    %1 = arith.truncf %0 : vector<512x16xf32> to vector<512x16xbf16>
    %c0_1 = arith.constant 0 : index
    %c0_2 = arith.constant 0 : index
    %2 = vector.load %arg2[%c0_1, %c0_2] : memref<16x128xbf16, #tpu.memory_space<vmem>>, vector<16x128xbf16>
    %cst = arith.constant dense<0.000000e+00> : vector<512x128xf32>
    %3 = tpu.matmul %1, %2, %cst {dimension_numbers = #tpu.dot_dimension_numbers<[1], [0], [0], [1], [0, 0, 1, 1], [], []>} : vector<512x16xbf16>, vector<16x128xbf16>, vector<512x128xf32> -> vector<512x128xf32>
    %cst_3 = arith.constant 5.000000e-01 : f32
    %4 = vector.broadcast %cst_3 : f32 to vector<512x128xf32>
    %5 = arith.mulf %4, %3 : vector<512x128xf32>
    %cst_4 = arith.constant 4.471500e-02 : f32
    %6 = vector.broadcast %cst_4 : f32 to vector<512x128xf32>
    %7 = arith.mulf %6, %3 : vector<512x128xf32>
    %8 = arith.mulf %7, %3 : vector<512x128xf32>
    %9 = arith.mulf %8, %3 : vector<512x128xf32>
    %10 = arith.addf %3, %9 : vector<512x128xf32>
    %cst_5 = arith.constant 0.797884583 : f32
    %11 = vector.broadcast %cst_5 : f32 to vector<512x128xf32>
    %12 = arith.mulf %11, %10 : vector<512x128xf32>
    %13 = math.tanh %12 : vector<512x128xf32>
    %cst_6 = arith.constant 1.000000e+00 : f32
    %14 = vector.broadcast %cst_6 : f32 to vector<512x128xf32>
    %15 = arith.addf %14, %13 : vector<512x128xf32>
    %16 = arith.mulf %5, %15 : vector<512x128xf32>
    %cst_7 = arith.constant dense<0.000000e+00> : vector<512xf32>
    %17 = vector.multi_reduction <add>, %16, %cst_7 [1] : vector<512x128xf32> to vector<512xf32>
    %18 = vector.shape_cast %17 : vector<512xf32> to vector<512x1xf32>
    %19 = arith.mulf %16, %16 : vector<512x128xf32>
    %cst_8 = arith.constant dense<0.000000e+00> : vector<512xf32>
    %20 = vector.multi_reduction <add>, %19, %cst_8 [1] : vector<512x128xf32> to vector<512xf32>
    %21 = vector.shape_cast %20 : vector<512xf32> to vector<512x1xf32>
    %cst_9 = arith.constant 3.125000e-02 : f32
    %22 = vector.broadcast %cst_9 : f32 to vector<512x1xf32>
    %23 = arith.mulf %18, %22 : vector<512x1xf32>
    %cst_10 = arith.constant 3.125000e-02 : f32
    %24 = vector.broadcast %cst_10 : f32 to vector<512x1xf32>
    %25 = arith.mulf %21, %24 : vector<512x1xf32>
    %26 = arith.mulf %23, %23 : vector<512x1xf32>
    %27 = arith.subf %25, %26 : vector<512x1xf32>
    %cst_11 = arith.constant 0.000000e+00 : f32
    %28 = vector.broadcast %cst_11 : f32 to vector<512x1xf32>
    %29 = arith.maximumf %27, %28 : vector<512x1xf32>
    %30 = vector.broadcast %23 : vector<512x1xf32> to vector<512x128xf32>
    %31 = arith.subf %16, %30 : vector<512x128xf32>
    %cst_12 = arith.constant 9.99999974E-6 : f32
    %32 = vector.broadcast %cst_12 : f32 to vector<512x1xf32>
    %33 = arith.addf %29, %32 : vector<512x1xf32>
    %34 = math.rsqrt %33 : vector<512x1xf32>
    %35 = vector.broadcast %34 : vector<512x1xf32> to vector<512x128xf32>
    %36 = arith.mulf %31, %35 : vector<512x128xf32>
    %37 = arith.truncf %36 : vector<512x128xf32> to vector<512x128xbf16>
    %c0_13 = arith.constant 0 : index
    %c0_14 = arith.constant 0 : index
    %38 = vector.load %arg3[%c0_13, %c0_14] : memref<128x128xbf16, #tpu.memory_space<vmem>>, vector<128x128xbf16>
    %cst_15 = arith.constant dense<0.000000e+00> : vector<512x128xf32>
    %39 = tpu.matmul %37, %38, %cst_15 {dimension_numbers = #tpu.dot_dimension_numbers<[1], [0], [0], [1], [0, 0, 1, 1], [], []>} : vector<512x128xbf16>, vector<128x128xbf16>, vector<512x128xf32> -> vector<512x128xf32>
    %c0_16 = arith.constant 0 : index
    %c0_17 = arith.constant 0 : index
    %40 = vector.load %arg4[%c0_16, %c0_17] : memref<1x128xf32, #tpu.memory_space<vmem>>, vector<1x128xf32>
    %41 = vector.broadcast %40 : vector<1x128xf32> to vector<512x128xf32>
    %42 = arith.addf %39, %41 : vector<512x128xf32>
    %c0_18 = arith.constant 0 : index
    %c0_19 = arith.constant 0 : index
    %43 = vector.load %arg5[%c0_18, %c0_19] : memref<512x128xf32, #tpu.memory_space<vmem>>, vector<512x128xf32>
    tpu.vector_store %arg5[%c0_18, %c0_19], %42 {strides = array<i32>} : memref<512x128xf32, #tpu.memory_space<vmem>>, vector<512x128xf32>,
    return
  }
  func.func @transform_0(%arg0: i32) -> (i32, i32) {
    %c0_i32 = arith.constant 0 : i32
    %c0_i32_0 = arith.constant 0 : i32
    return %arg0, %c0_i32 : i32, i32
  }
  func.func @transform_1(%arg0: i32) -> (i32, i32) {
    %c0_i32 = arith.constant 0 : i32
    %c0_i32_0 = arith.constant 0 : i32
    %c0_i32_1 = arith.constant 0 : i32
    return %c0_i32, %c0_i32_0 : i32, i32
  }
  func.func @transform_2(%arg0: i32) -> (i32, i32) {
    %c0_i32 = arith.constant 0 : i32
    %c0_i32_0 = arith.constant 0 : i32
    %c0_i32_1 = arith.constant 0 : i32
    return %c0_i32, %c0_i32_0 : i32, i32
  }
  func.func @transform_3(%arg0: i32) -> (i32, i32) {
    %c0_i32 = arith.constant 0 : i32
    %c0_i32_0 = arith.constant 0 : i32
    %c0_i32_1 = arith.constant 0 : i32
    return %c0_i32, %c0_i32_0 : i32, i32
  }
  func.func @transform_4(%arg0: i32) -> (i32, i32) {
    %c0_i32 = arith.constant 0 : i32
    %c0_i32_0 = arith.constant 0 : i32
    return %arg0, %c0_i32 : i32, i32
  }
}

</mosaic_0001>

<llo_original>
// kernel: tpu_custom_call.1
$region0: #{tpu_custom_call.1}
  #allocation0 [shape = 'u32[]', space=smem, size = 0x4, offset = 0x4, fixed_abs, tag = 'smem constant byte address 0x4 - core index']
  #allocation1 [shape = 'u32[144,128]{1,0:T(1,128)}', space=vmem, size = 0x12000, scoped, tag = 'internal scratch']
  %s0 = inlined_call_operand.vmem [shape: f32[1024,16], index: 0, kind: input, shape index: {}]
  %s1 = inlined_call_operand.vmem [shape: bf16[16,128], index: 1, kind: input, shape index: {}]
  %s2 = inlined_call_operand.vmem [shape: bf16[128,128], index: 2, kind: input, shape index: {}]
  %s3 = inlined_call_operand.vmem [shape: f32[1,128], index: 3, kind: input, shape index: {}]
  %s4 = inlined_call_operand.hbm [shape: f32[1024,128], index: 4, kind: output, shape index: {}]
  %s5 = sld [smem:[#allocation0]]
  $region49: #{tpu_custom_call.1} parent=0
    _
  %s7 = ssub.s32 1, %s5
  %s8 = scalar_select 0, %s7, %s5
  $region1: #{tpu_custom_call.1} parent=0
    #allocation2 [shape = 'u8[524288]{0}', space=vmem, size = 0x80000, scoped, tag = 'output window, operand 0']
    #allocation3 [shape = 's32[2]{0}', space=sflag, size = 0x8, scoped, tag = 'scoped memory for tpu_custom_call.1']
    %9 = vsyncpa [#allocation3], 0
    %s10 = scalar_lea.sflag [#allocation3], 1
    %11 = vsyncpa %s10, 0
    loop: start=0, step=1, limit=4
    $region2: #{tpu_custom_call.1} parent=1 // loop_pre_header
      _
    $region3: #{tpu_custom_call.1} parent=1 // loop_header
      %s13 = sphi 0, %s17
      %p14 = scmp.ge.s32.totalorder %s13, 4
      %s23 = sphi 0, %s25
      %s26 = sphi 0, %s23
      %s27 = sphi 0, %s26
      %s43 = sphi 0, %s27
      %s47 = sphi 0, %s47
      %s49 = sphi 0, %s47
      %s50 = sphi 0, %s49
      %s64 = sphi 0, %s50
      %s68 = sphi 0, %s68
      %s70 = sphi 0, %s68
      %s71 = sphi 0, %s70
      %s85 = sphi 0, %s71
      %s89 = sphi 0, %s89
      %s91 = sphi 0, %s89
      %s92 = sphi 0, %s91
      %s106 = sphi 0, %s92
      %s112 = sphi 0, %s114
      %s115 = sphi 0, %s112
      %s116 = sphi 0, %s115
      %s132 = sphi 0, %s116
    $region4: #{tpu_custom_call.1} parent=1 // loop_header_branch
      %16 = sbr.rel (%p14) target = $region8
    $region5: #{tpu_custom_call.1} parent=1 // loop_body
      %s18 = ssub.s32 %s13, 1
      %s19 = ssub.s32 %s13, 2
      %s20 = sadd.s32 %s13, 1
      %s21 = ssub.s32 %s13, %s20
      %p22 = scmp.eq.s32.totalorder %s21, 0
      %s24 = sadd.s32 %s23, 1
      %s25 = scalar_select %p22, %s23, %s24
      %p28 = pneg %p22
      %p29 = scmp.eq.s32.totalorder %s13, 1
      %p30 = por %p28, %p29
      %p31 = scmp.ne.s32.totalorder %s23, %s26
      %p32 = scmp.eq.s32.totalorder %s13, 0
      %p33 = por %p31, %p32
      %p34 = scmp.ne.s32.totalorder %s23, %s26
      %p35 = scmp.eq.s32.totalorder %s18, 1
      %p36 = por %p34, %p35
      %p37 = scmp.ne.s32.totalorder %s26, %s27
      %p38 = scmp.eq.s32.totalorder %s18, 0
      %p39 = por %p37, %p38
      %p40 = scmp.ne.s32.totalorder %s26, %s27
      %p41 = scmp.eq.s32.totalorder %s19, 1
      %p42 = por %p40, %p41
      %p44 = scmp.ne.s32.totalorder %s27, %s43
      %p45 = scmp.eq.s32.totalorder %s19, 0
      %p46 = por %p44, %p45
      %s48 = sadd.s32 %s47, 1
      %p51 = scmp.eq.s32.totalorder %s13, 1
      %p52 = scmp.ne.s32.totalorder %s47, %s49
      %p53 = scmp.eq.s32.totalorder %s13, 0
      %p54 = por %p52, %p53
      %p55 = scmp.ne.s32.totalorder %s47, %s49
      %p56 = scmp.eq.s32.totalorder %s18, 1
      %p57 = por %p55, %p56
      %p58 = scmp.ne.s32.totalorder %s49, %s50
      %p59 = scmp.eq.s32.totalorder %s18, 0
      %p60 = por %p58, %p59
      %p61 = scmp.ne.s32.totalorder %s49, %s50
      %p62 = scmp.eq.s32.totalorder %s19, 1
      %p63 = por %p61, %p62
      %p65 = scmp.ne.s32.totalorder %s50, %s64
      %p66 = scmp.eq.s32.totalorder %s19, 0
      %p67 = por %p65, %p66
      %s69 = sadd.s32 %s68, 1
      %p72 = scmp.eq.s32.totalorder %s13, 1
      %p73 = scmp.ne.s32.totalorder %s68, %s70
      %p74 = scmp.eq.s32.totalorder %s13, 0
      %p75 = por %p73, %p74
      %p76 = scmp.ne.s32.totalorder %s68, %s70
      %p77 = scmp.eq.s32.totalorder %s18, 1
      %p78 = por %p76, %p77
      %p79 = scmp.ne.s32.totalorder %s70, %s71
      %p80 = scmp.eq.s32.totalorder %s18, 0
      %p81 = por %p79, %p80
      %p82 = scmp.ne.s32.totalorder %s70, %s71
      %p83 = scmp.eq.s32.totalorder %s19, 1
      %p84 = por %p82, %p83
      %p86 = scmp.ne.s32.totalorder %s71, %s85
      %p87 = scmp.eq.s32.totalorder %s19, 0
      %p88 = por %p86, %p87
      %s90 = sadd.s32 %s89, 1
      %p93 = scmp.eq.s32.totalorder %s13, 1
      %p94 = scmp.ne.s32.totalorder %s89, %s91
      %p95 = scmp.eq.s32.totalorder %s13, 0
      %p96 = por %p94, %p95
      %p97 = scmp.ne.s32.totalorder %s89, %s91
      %p98 = scmp.eq.s32.totalorder %s18, 1
      %p99 = por %p97, %p98
      %p100 = scmp.ne.s32.totalorder %s91, %s92
      %p101 = scmp.eq.s32.totalorder %s18, 0
      %p102 = por %p100, %p101
      %p103 = scmp.ne.s32.totalorder %s91, %s92
      %p104 = scmp.eq.s32.totalorder %s19, 1
      %p105 = por %p103, %p104
      %p107 = scmp.ne.s32.totalorder %s92, %s106
      %p108 = scmp.eq.s32.totalorder %s19, 0
      %p109 = por %p107, %p108
      %s110 = ssub.s32 %s13, %s20
      %p111 = scmp.eq.s32.totalorder %s110, 0
      %s113 = sadd.s32 %s112, 1
      %s114 = scalar_select %p111, %s112, %s113
      %p117 = pneg %p111
      %p118 = scmp.eq.s32.totalorder %s13, 1
      %p119 = por %p117, %p118
      %p120 = scmp.ne.s32.totalorder %s112, %s115
      %p121 = scmp.eq.s32.totalorder %s13, 0
      %p122 = por %p120, %p121
      %p123 = scmp.ne.s32.totalorder %s112, %s115
      %p124 = scmp.eq.s32.totalorder %s18, 1
      %p125 = por %p123, %p124
      %p126 = scmp.ne.s32.totalorder %s115, %s116
      %p127 = scmp.eq.s32.totalorder %s18, 0
      %p128 = por %p126, %p127
      %p129 = scmp.ne.s32.totalorder %s115, %s116
      %p130 = scmp.eq.s32.totalorder %s19, 1
      %p131 = por %p129, %p130
      %p133 = scmp.ne.s32.totalorder %s116, %s132
      %p134 = scmp.eq.s32.totalorder %s19, 0
      %p135 = por %p133, %p134
      %p136 = scmp.le.s32.totalorder 1, %s13
      %p137 = scmp.lt.s32.totalorder %s13, 3
      %p138 = pnand %p136, %p137
      %p139 = pneg %p138
      // Predicated region
      $region9: #{tpu_custom_call.1} parent=5 // pred_check
        _
      $region10: #{tpu_custom_call.1} parent=5 // pred_check_branch
        %141 = sbr.rel (%p138) target = $region12
      $region11: #{tpu_custom_call.1} parent=5 // pred_region
        %s142 = ssub.s32 %s13, 1
        // Predicated region
        $region13: #{tpu_custom_call.1} parent=11 // pred_check
          %p143 = pneg %p60
        $region14: #{tpu_custom_call.1} parent=11 // pred_check_branch
          %145 = sbr.rel (%p143) target = $region16
        $region15: #{tpu_custom_call.1} parent=11 // pred_region
          _
        $region16: #{tpu_custom_call.1} parent=11 // pred_fallthru
          _
        // Predicated region
        $region17: #{tpu_custom_call.1} parent=11 // pred_check
          %p146 = pneg %p81
        $region18: #{tpu_custom_call.1} parent=11 // pred_check_branch
          %148 = sbr.rel (%p146) target = $region20
        $region19: #{tpu_custom_call.1} parent=11 // pred_region
          _
        $region20: #{tpu_custom_call.1} parent=11 // pred_fallthru
          _
        // Predicated region
        $region21: #{tpu_custom_call.1} parent=11 // pred_check
          %p149 = pneg %p102
        $region22: #{tpu_custom_call.1} parent=11 // pred_check_branch
          %151 = sbr.rel (%p149) target = $region24
        $region23: #{tpu_custom_call.1} parent=11 // pred_region
          _
        $region24: #{tpu_custom_call.1} parent=11 // pred_fallthru
          _
      $region12: #{tpu_custom_call.1} parent=5 // pred_fallthru
        _
      %p152 = scmp.lt.s32.totalorder %s13, 2
      // Predicated region
      $region25: #{tpu_custom_call.1} parent=5 // pred_check
        %p153 = pneg %p152
      $region26: #{tpu_custom_call.1} parent=5 // pred_check_branch
        %155 = sbr.rel (%p153) target = $region28
      $region27: #{tpu_custom_call.1} parent=5 // pred_region
        // Predicated region
        $region29: #{tpu_custom_call.1} parent=27 // pred_check
          %p156 = pneg %p33
        $region30: #{tpu_custom_call.1} parent=27 // pred_check_branch
          %158 = sbr.rel (%p156) target = $region32
        $region31: #{tpu_custom_call.1} parent=27 // pred_region
          %s159 = smul.u32 64, %s13
          %p160 = scmp.lt.s32.totalorder %s159, 127
          %s161 = scalar_select %p160, %s159, 127
          %s162 = smul.addr %s161, 8
          %s163 = scalar_lea.vmem %s0, %s162
          %s164 = smul.u32 64, %s13
        $region32: #{tpu_custom_call.1} parent=27 // pred_fallthru
          _
      $region28: #{tpu_custom_call.1} parent=5 // pred_fallthru
        _
      %p165 = scmp.le.s32.totalorder 1, %s13
      %p166 = scmp.lt.s32.totalorder %s13, 3
      %p167 = pnand %p165, %p166
      %p168 = pneg %p167
      // Predicated region
      $region33: #{tpu_custom_call.1} parent=5 // pred_check
        _
      $region34: #{tpu_custom_call.1} parent=5 // pred_check_branch
        %170 = sbr.rel (%p167) target = $region36
      $region35: #{tpu_custom_call.1} parent=5 // pred_region
        %s171 = ssub.s32 %s13, 1
        %s172 = smul.u32 64, %s18
        %p173 = scmp.lt.s32.totalorder %s172, 127
        %s174 = scalar_select %p173, %s172, 127
        %s175 = smul.addr %s174, 8
        %s176 = scalar_lea.vmem %s0, %s175
        %p177 = pneg %p39
        %p178 = pneg %p36
        %p179 = pneg %p60
        %p180 = pneg %p57
        %p181 = pneg %p81
        %p182 = pneg %p78
        %p183 = pneg %p102
        %p184 = pneg %p99
        %p185 = pneg %p128
        %p186 = pneg %p125
        %s187 = sand.u32 %s115, 1
        %s188 = scalar_lea.sflag [#allocation3], %s187
        %s189 = sand.u32 %s115, 1
        %s190 = smul.addr %s189, 512
        %s191 = scalar_lea.vmem [#allocation2], %s190
        %s192 = smul.u32 64, %s18
        %p193 = scmp.lt.s32.totalorder %s192, 127
        %s194 = scalar_select %p193, %s192, 127
        %s195 = smul.addr %s194, 8
        %s196 = scalar_lea.vmem %s0, %s195
        %s197 = smul.u32 64, %s18
        %s198 = smul.u32 64, %s18
        %v200 = vld [vmem:[%s196] sm:$0xff]
        %v201 = vld [vmem:[%s196 + $0x8] sm:$0xff]
        %v202 = vld [vmem:[%s196 + $0x10] sm:$0xff]
        %v203 = vld [vmem:[%s196 + $0x18] sm:$0xff]
        %v204 = vld [vmem:[%s196 + $0x20] sm:$0xff]
        %v205 = vld [vmem:[%s196 + $0x28] sm:$0xff]
        %v206 = vld [vmem:[%s196 + $0x30] sm:$0xff]
        %v207 = vld [vmem:[%s196 + $0x38] sm:$0xff]
        %v208 = vld [vmem:[%s196 + $0x40] sm:$0xff]
        %v209 = vld [vmem:[%s196 + $0x48] sm:$0xff]
        %v210 = vld [vmem:[%s196 + $0x50] sm:$0xff]
        %v211 = vld [vmem:[%s196 + $0x58] sm:$0xff]
        %v212 = vld [vmem:[%s196 + $0x60] sm:$0xff]
        %v213 = vld [vmem:[%s196 + $0x68] sm:$0xff]
        %v214 = vld [vmem:[%s196 + $0x70] sm:$0xff]
        %v215 = vld [vmem:[%s196 + $0x78] sm:$0xff]
        %v216 = vld [vmem:[%s196 + $0x80] sm:$0xff]
        %v217 = vld [vmem:[%s196 + $0x88] sm:$0xff]
        %v218 = vld [vmem:[%s196 + $0x90] sm:$0xff]
        %v219 = vld [vmem:[%s196 + $0x98] sm:$0xff]
        %v220 = vld [vmem:[%s196 + $0xa0] sm:$0xff]
        %v221 = vld [vmem:[%s196 + $0xa8] sm:$0xff]
        %v222 = vld [vmem:[%s196 + $0xb0] sm:$0xff]
        %v223 = vld [vmem:[%s196 + $0xb8] sm:$0xff]
        %v224 = vld [vmem:[%s196 + $0xc0] sm:$0xff]
        %v225 = vld [vmem:[%s196 + $0xc8] sm:$0xff]
        %v226 = vld [vmem:[%s196 + $0xd0] sm:$0xff]
        %v227 = vld [vmem:[%s196 + $0xd8] sm:$0xff]
        %v228 = vld [vmem:[%s196 + $0xe0] sm:$0xff]
        %v229 = vld [vmem:[%s196 + $0xe8] sm:$0xff]
        %v230 = vld [vmem:[%s196 + $0xf0] sm:$0xff]
        %v231 = vld [vmem:[%s196 + $0xf8] sm:$0xff]
        %v232 = vld [vmem:[%s196 + $0x100] sm:$0xff]
        %v233 = vld [vmem:[%s196 + $0x108] sm:$0xff]
        %v234 = vld [vmem:[%s196 + $0x110] sm:$0xff]
        %v235 = vld [vmem:[%s196 + $0x118] sm:$0xff]
        %v236 = vld [vmem:[%s196 + $0x120] sm:$0xff]
        %v237 = vld [vmem:[%s196 + $0x128] sm:$0xff]
        %v238 = vld [vmem:[%s196 + $0x130] sm:$0xff]
        %v239 = vld [vmem:[%s196 + $0x138] sm:$0xff]
        %v240 = vld [vmem:[%s196 + $0x140] sm:$0xff]
        %v241 = vld [vmem:[%s196 + $0x148] sm:$0xff]
        %v242 = vld [vmem:[%s196 + $0x150] sm:$0xff]
        %v243 = vld [vmem:[%s196 + $0x158] sm:$0xff]
        %v244 = vld [vmem:[%s196 + $0x160] sm:$0xff]
        %v245 = vld [vmem:[%s196 + $0x168] sm:$0xff]
        %v246 = vld [vmem:[%s196 + $0x170] sm:$0xff]
        %v247 = vld [vmem:[%s196 + $0x178] sm:$0xff]
        %v248 = vld [vmem:[%s196 + $0x180] sm:$0xff]
        %v249 = vld [vmem:[%s196 + $0x188] sm:$0xff]
        %v250 = vld [vmem:[%s196 + $0x190] sm:$0xff]
        %v251 = vld [vmem:[%s196 + $0x198] sm:$0xff]
        %v252 = vld [vmem:[%s196 + $0x1a0] sm:$0xff]
        %v253 = vld [vmem:[%s196 + $0x1a8] sm:$0xff]
        %v254 = vld [vmem:[%s196 + $0x1b0] sm:$0xff]
        %v255 = vld [vmem:[%s196 + $0x1b8] sm:$0xff]
        %v256 = vld [vmem:[%s196 + $0x1c0] sm:$0xff]
        %v257 = vld [vmem:[%s196 + $0x1c8] sm:$0xff]
        %v258 = vld [vmem:[%s196 + $0x1d0] sm:$0xff]
        %v259 = vld [vmem:[%s196 + $0x1d8] sm:$0xff]
        %v260 = vld [vmem:[%s196 + $0x1e0] sm:$0xff]
        %v261 = vld [vmem:[%s196 + $0x1e8] sm:$0xff]
        %v262 = vld [vmem:[%s196 + $0x1f0] sm:$0xff]
        %v263 = vld [vmem:[%s196 + $0x1f8] sm:$0xff]
        %v264 = vpack.c.bf16 %v201, %v200
        %v265 = vpack.c.bf16 %v203, %v202
        %v266 = vpack.c.bf16 %v205, %v204
        %v267 = vpack.c.bf16 %v207, %v206
        %v268 = vpack.c.bf16 %v209, %v208
        %v269 = vpack.c.bf16 %v211, %v210
        %v270 = vpack.c.bf16 %v213, %v212
        %v271 = vpack.c.bf16 %v215, %v214
        %v272 = vpack.c.bf16 %v217, %v216
        %v273 = vpack.c.bf16 %v219, %v218
        %v274 = vpack.c.bf16 %v221, %v220
        %v275 = vpack.c.bf16 %v223, %v222
        %v276 = vpack.c.bf16 %v225, %v224
        %v277 = vpack.c.bf16 %v227, %v226
        %v278 = vpack.c.bf16 %v229, %v228
        %v279 = vpack.c.bf16 %v231, %v230
        %v280 = vpack.c.bf16 %v233, %v232
        %v281 = vpack.c.bf16 %v235, %v234
        %v282 = vpack.c.bf16 %v237, %v236
        %v283 = vpack.c.bf16 %v239, %v238
        %v284 = vpack.c.bf16 %v241, %v240
        %v285 = vpack.c.bf16 %v243, %v242
        %v286 = vpack.c.bf16 %v245, %v244
        %v287 = vpack.c.bf16 %v247, %v246
        %v288 = vpack.c.bf16 %v249, %v248
        %v289 = vpack.c.bf16 %v251, %v250
        %v290 = vpack.c.bf16 %v253, %v252
        %v291 = vpack.c.bf16 %v255, %v254
        %v292 = vpack.c.bf16 %v257, %v256
        %v293 = vpack.c.bf16 %v259, %v258
        %v294 = vpack.c.bf16 %v261, %v260
        %v295 = vpack.c.bf16 %v263, %v262
        %v296 = vld [vmem:[%s1] sm:$0xf]
        %v297 = vld [vmem:[%s1 + $0x4] sm:$0xf]
        %v300 = vunpack.c.l.b16 %v296
        %v301 = vunpack.c.l.b16 %v297
        %v302 = vpack.c.b16 %v301, %v300
        %vm304 = vcmask 130048
        %v306 = vsel %vm304, %v264, 0
        %v309 = vsel %vm304, %v265, 0
        %v312 = vsel %vm304, %v266, 0
        %v315 = vsel %vm304, %v267, 0
        %v318 = vsel %vm304, %v268, 0
        %v321 = vsel %vm304, %v269, 0
        %v324 = vsel %vm304, %v270, 0
        %v327 = vsel %vm304, %v271, 0
        %v330 = vsel %vm304, %v272, 0
        %v333 = vsel %vm304, %v273, 0
        %v336 = vsel %vm304, %v274, 0
        %v339 = vsel %vm304, %v275, 0
        %v342 = vsel %vm304, %v276, 0
        %v345 = vsel %vm304, %v277, 0
        %v348 = vsel %vm304, %v278, 0
        %v351 = vsel %vm304, %v279, 0
        %v354 = vsel %vm304, %v280, 0
        %v357 = vsel %vm304, %v281, 0
        %v360 = vsel %vm304, %v282, 0
        %v363 = vsel %vm304, %v283, 0
        %v366 = vsel %vm304, %v284, 0
        %v369 = vsel %vm304, %v285, 0
        %v372 = vsel %vm304, %v286, 0
        %v375 = vsel %vm304, %v287, 0
        %v378 = vsel %vm304, %v288, 0
        %v381 = vsel %vm304, %v289, 0
        %v384 = vsel %vm304, %v290, 0
        %v387 = vsel %vm304, %v291, 0
        %v390 = vsel %vm304, %v292, 0
        %v393 = vsel %vm304, %v293, 0
        %v396 = vsel %vm304, %v294, 0
        %v399 = vsel %vm304, %v295, 0
        %401 = vmatprep.subr.bf16.mxu0 0
        %402 = vmatpush1.bf16.msra.mxu0 %v302
        %403 = vmatprep.subr.bf16.mxu0 0
        %404 = vmatpush1.bf16.msra.mxu0 0
        %405 = vmatprep.subr.bf16.mxu0 0
        %406 = vmatpush1.bf16.msra.mxu0 0
        %407 = vmatprep.subr.bf16.mxu0 0
        %408 = vmatpush1.bf16.msra.mxu0 0
        %409 = vmatprep.subr.bf16.mxu0 0
        %410 = vmatpush1.bf16.msra.mxu0 0
        %411 = vmatprep.subr.bf16.mxu0 0
        %412 = vmatpush1.bf16.msra.mxu0 0
        %413 = vmatprep.subr.bf16.mxu0 0
        %414 = vmatpush1.bf16.msra.mxu0 0
        %415 = vmatprep.subr.bf16.mxu0 0
        %416 = vmatpush1.bf16.msra.mxu0 0
        %417 = vmatprep.subr.bf16.mxu0 0
        %418 = vmatpush1.bf16.msra.mxu0 0
        %419 = vmatprep.subr.bf16.mxu0 0
        %420 = vmatpush1.bf16.msra.mxu0 0
        %421 = vmatprep.subr.bf16.mxu0 0
        %422 = vmatpush1.bf16.msra.mxu0 0
        %423 = vmatprep.subr.bf16.mxu0 0
        %424 = vmatpush1.bf16.msra.mxu0 0
        %425 = vmatprep.subr.bf16.mxu0 0
        %426 = vmatpush1.bf16.msra.mxu0 0
        %427 = vmatprep.subr.bf16.mxu0 0
        %428 = vmatpush1.bf16.msra.mxu0 0
        %429 = vmatprep.subr.bf16.mxu0 0
        %430 = vmatpush1.bf16.msra.mxu0 0
        %431 = vmatprep.subr.bf16.mxu0 0
        %432 = vmatpush1.bf16.msra.mxu0 0
        %433 = vmatprep.mubr.bf16.mxu0 0
        %434 = vmatmul.mubr.bf16.gmra.mrb[0].mxu0 %v306
        %v435 = vpop.f32.mrb[0].mxu0
        %v436 = vadd.f32 0.0, %v435
        %v437 = vpop.f32.mrb[0].mxu0
        %v438 = vpop.f32.mrb[0].mxu0
        %v439 = vadd.f32 0.0, %v438
        %v440 = vpop.f32.mrb[0].mxu0
        %441 = vmatprep.mubr.bf16.mxu0 0
        %442 = vmatmul.mubr.bf16.gmra.mrb[0].mxu0 %v309
        %v443 = vpop.f32.mrb[0].mxu0
        %v444 = vadd.f32 0.0, %v443
        %v445 = vpop.f32.mrb[0].mxu0
        %v446 = vpop.f32.mrb[0].mxu0
        %v447 = vadd.f32 0.0, %v446
        %v448 = vpop.f32.mrb[0].mxu0
        %449 = vmatprep.mubr.bf16.mxu0 0
        %450 = vmatmul.mubr.bf16.gmra.mrb[0].mxu0 %v312
        %v451 = vpop.f32.mrb[0].mxu0
        %v452 = vadd.f32 0.0, %v451
        %v453 = vpop.f32.mrb[0].mxu0
        %v454 = vpop.f32.mrb[0].mxu0
        %v455 = vadd.f32 0.0, %v454
        %v456 = vpop.f32.mrb[0].mxu0
        %457 = vmatprep.mubr.bf16.mxu0 0
        %458 = vmatmul.mubr.bf16.gmra.mrb[0].mxu0 %v315
        %v459 = vpop.f32.mrb[0].mxu0
        %v460 = vadd.f32 0.0, %v459
        %v461 = vpop.f32.mrb[0].mxu0
        %v462 = vpop.f32.mrb[0].mxu0
        %v463 = vadd.f32 0.0, %v462
        %v464 = vpop.f32.mrb[0].mxu0
        %465 = vmatprep.mubr.bf16.mxu0 0
        %466 = vmatmul.mubr.bf16.gmra.mrb[0].mxu0 %v318
        %v467 = vpop.f32.mrb[0].mxu0
        %v468 = vadd.f32 0.0, %v467
        %v469 = vpop.f32.mrb[0].mxu0
        %v470 = vpop.f32.mrb[0].mxu0
        %v471 = vadd.f32 0.0, %v470
        %v472 = vpop.f32.mrb[0].mxu0
        %473 = vmatprep.mubr.bf16.mxu0 0
        %474 = vmatmul.mubr.bf16.gmra.mrb[0].mxu0 %v321
        %v475 = vpop.f32.mrb[0].mxu0
        %v476 = vadd.f32 0.0, %v475
        %v477 = vpop.f32.mrb[0].mxu0
        %v478 = vpop.f32.mrb[0].mxu0
        %v479 = vadd.f32 0.0, %v478
        %v480 = vpop.f32.mrb[0].mxu0
        %481 = vmatprep.mubr.bf16.mxu0 0
        %482 = vmatmul.mubr.bf16.gmra.mrb[0].mxu0 %v324
        %v483 = vpop.f32.mrb[0].mxu0
        %v484 = vadd.f32 0.0, %v483
        %v485 = vpop.f32.mrb[0].mxu0
        %v486 = vpop.f32.mrb[0].mxu0
        %v487 = vadd.f32 0.0, %v486
        %v488 = vpop.f32.mrb[0].mxu0
        %489 = vmatprep.mubr.bf16.mxu0 0
        %490 = vmatmul.mubr.bf16.gmra.mrb[0].mxu0 %v327
        %v491 = vpop.f32.mrb[0].mxu0
        %v492 = vadd.f32 0.0, %v491
        %v493 = vpop.f32.mrb[0].mxu0
        %v494 = vpop.f32.mrb[0].mxu0
        %v495 = vadd.f32 0.0, %v494
        %v496 = vpop.f32.mrb[0].mxu0
        %497 = vmatprep.mubr.bf16.mxu0 0
        %498 = vmatmul.mubr.bf16.gmra.mrb[0].mxu0 %v330
        %v499 = vpop.f32.mrb[0].mxu0
        %v500 = vadd.f32 0.0, %v499
        %v501 = vpop.f32.mrb[0].mxu0
        %v502 = vpop.f32.mrb[0].mxu0
        %v503 = vadd.f32 0.0, %v502
        %v504 = vpop.f32.mrb[0].mxu0
        %505 = vmatprep.mubr.bf16.mxu0 0
        %506 = vmatmul.mubr.bf16.gmra.mrb[0].mxu0 %v333
        %v507 = vpop.f32.mrb[0].mxu0
        %v508 = vadd.f32 0.0, %v507
        %v509 = vpop.f32.mrb[0].mxu0
        %v510 = vpop.f32.mrb[0].mxu0
        %v511 = vadd.f32 0.0, %v510
        %v512 = vpop.f32.mrb[0].mxu0
        %513 = vmatprep.mubr.bf16.mxu0 0
        %514 = vmatmul.mubr.bf16.gmra.mrb[0].mxu0 %v336
        %v515 = vpop.f32.mrb[0].mxu0
        %v516 = vadd.f32 0.0, %v515
        %v517 = vpop.f32.mrb[0].mxu0
        %v518 = vpop.f32.mrb[0].mxu0
        %v519 = vadd.f32 0.0, %v518
        %v520 = vpop.f32.mrb[0].mxu0
        %521 = vmatprep.mubr.bf16.mxu0 0
        %522 = vmatmul.mubr.bf16.gmra.mrb[0].mxu0 %v339
        %v523 = vpop.f32.mrb[0].mxu0
        %v524 = vadd.f32 0.0, %v523
        %v525 = vpop.f32.mrb[0].mxu0
        %v526 = vpop.f32.mrb[0].mxu0
        %v527 = vadd.f32 0.0, %v526
        %v528 = vpop.f32.mrb[0].mxu0
        %529 = vmatprep.mubr.bf16.mxu0 0
        %530 = vmatmul.mubr.bf16.gmra.mrb[0].mxu0 %v342
        %v531 = vpop.f32.mrb[0].mxu0
        %v532 = vadd.f32 0.0, %v531
        %v533 = vpop.f32.mrb[0].mxu0
        %v534 = vpop.f32.mrb[0].mxu0
        %v535 = vadd.f32 0.0, %v534
        %v536 = vpop.f32.mrb[0].mxu0
        %537 = vmatprep.mubr.bf16.mxu0 0
        %538 = vmatmul.mubr.bf16.gmra.mrb[0].mxu0 %v345
        %v539 = vpop.f32.mrb[0].mxu0
        %v540 = vadd.f32 0.0, %v539
        %v541 = vpop.f32.mrb[0].mxu0
        %v542 = vpop.f32.mrb[0].mxu0
        %v543 = vadd.f32 0.0, %v542
        %v544 = vpop.f32.mrb[0].mxu0
        %545 = vmatprep.mubr.bf16.mxu0 0
        %546 = vmatmul.mubr.bf16.gmra.mrb[0].mxu0 %v348
        %v547 = vpop.f32.mrb[0].mxu0
        %v548 = vadd.f32 0.0, %v547
        %v549 = vpop.f32.mrb[0].mxu0
        %v550 = vpop.f32.mrb[0].mxu0
        %v551 = vadd.f32 0.0, %v550
        %v552 = vpop.f32.mrb[0].mxu0
        %553 = vmatprep.mubr.bf16.mxu0 0
        %554 = vmatmul.mubr.bf16.gmra.mrb[0].mxu0 %v351
        %v555 = vpop.f32.mrb[0].mxu0
        %v556 = vadd.f32 0.0, %v555
        %v557 = vpop.f32.mrb[0].mxu0
        %v558 = vpop.f32.mrb[0].mxu0
        %v559 = vadd.f32 0.0, %v558
        %v560 = vpop.f32.mrb[0].mxu0
        %561 = vmatprep.mubr.bf16.mxu0 0
        %562 = vmatmul.mubr.bf16.gmra.mrb[0].mxu0 %v354
        %v563 = vpop.f32.mrb[0].mxu0
        %v564 = vadd.f32 0.0, %v563
        %v565 = vpop.f32.mrb[0].mxu0
        %v566 = vpop.f32.mrb[0].mxu0
        %v567 = vadd.f32 0.0, %v566
        %v568 = vpop.f32.mrb[0].mxu0
        %569 = vmatprep.mubr.bf16.mxu0 0
        %570 = vmatmul.mubr.bf16.gmra.mrb[0].mxu0 %v357
        %v571 = vpop.f32.mrb[0].mxu0
        %v572 = vadd.f32 0.0, %v571
        %v573 = vpop.f32.mrb[0].mxu0
        %v574 = vpop.f32.mrb[0].mxu0
        %v575 = vadd.f32 0.0, %v574
        %v576 = vpop.f32.mrb[0].mxu0
        %577 = vmatprep.mubr.bf16.mxu0 0
        %578 = vmatmul.mubr.bf16.gmra.mrb[0].mxu0 %v360
        %v579 = vpop.f32.mrb[0].mxu0
        %v580 = vadd.f32 0.0, %v579
        %v581 = vpop.f32.mrb[0].mxu0
        %v582 = vpop.f32.mrb[0].mxu0
        %v583 = vadd.f32 0.0, %v582
        %v584 = vpop.f32.mrb[0].mxu0
        %585 = vmatprep.mubr.bf16.mxu0 0
        %586 = vmatmul.mubr.bf16.gmra.mrb[0].mxu0 %v363
        %v587 = vpop.f32.mrb[0].mxu0
        %v588 = vadd.f32 0.0, %v587
        %v589 = vpop.f32.mrb[0].mxu0
        %v590 = vpop.f32.mrb[0].mxu0
        %v591 = vadd.f32 0.0, %v590
        %v592 = vpop.f32.mrb[0].mxu0
        %593 = vmatprep.mubr.bf16.mxu0 0
        %594 = vmatmul.mubr.bf16.gmra.mrb[0].mxu0 %v366
        %v595 = vpop.f32.mrb[0].mxu0
        %v596 = vadd.f32 0.0, %v595
        %v597 = vpop.f32.mrb[0].mxu0
        %v598 = vpop.f32.mrb[0].mxu0
        %v599 = vadd.f32 0.0, %v598
        %v600 = vpop.f32.mrb[0].mxu0
        %601 = vmatprep.mubr.bf16.mxu0 0
        %602 = vmatmul.mubr.bf16.gmra.mrb[0].mxu0 %v369
        %v603 = vpop.f32.mrb[0].mxu0
        %v604 = vadd.f32 0.0, %v603
        %v605 = vpop.f32.mrb[0].mxu0
        %v606 = vpop.f32.mrb[0].mxu0
        %v607 = vadd.f32 0.0, %v606
        %v608 = vpop.f32.mrb[0].mxu0
        %609 = vmatprep.mubr.bf16.mxu0 0
        %610 = vmatmul.mubr.bf16.gmra.mrb[0].mxu0 %v372
        %v611 = vpop.f32.mrb[0].mxu0
        %v612 = vadd.f32 0.0, %v611
        %v613 = vpop.f32.mrb[0].mxu0
        %v614 = vpop.f32.mrb[0].mxu0
        %v615 = vadd.f32 0.0, %v614
        %v616 = vpop.f32.mrb[0].mxu0
        %617 = vmatprep.mubr.bf16.mxu0 0
        %618 = vmatmul.mubr.bf16.gmra.mrb[0].mxu0 %v375
        %v619 = vpop.f32.mrb[0].mxu0
        %v620 = vadd.f32 0.0, %v619
        %v621 = vpop.f32.mrb[0].mxu0
        %v622 = vpop.f32.mrb[0].mxu0
        %v623 = vadd.f32 0.0, %v622
        %v624 = vpop.f32.mrb[0].mxu0
        %625 = vmatprep.mubr.bf16.mxu0 0
        %626 = vmatmul.mubr.bf16.gmra.mrb[0].mxu0 %v378
        %v627 = vpop.f32.mrb[0].mxu0
        %v628 = vadd.f32 0.0, %v627
        %v629 = vpop.f32.mrb[0].mxu0
        %v630 = vpop.f32.mrb[0].mxu0
        %v631 = vadd.f32 0.0, %v630
        %v632 = vpop.f32.mrb[0].mxu0
        %633 = vmatprep.mubr.bf16.mxu0 0
        %634 = vmatmul.mubr.bf16.gmra.mrb[0].mxu0 %v381
        %v635 = vpop.f32.mrb[0].mxu0
        %v636 = vadd.f32 0.0, %v635
        %v637 = vpop.f32.mrb[0].mxu0
        %v638 = vpop.f32.mrb[0].mxu0
        %v639 = vadd.f32 0.0, %v638
        %v640 = vpop.f32.mrb[0].mxu0
        %641 = vmatprep.mubr.bf16.mxu0 0
        %642 = vmatmul.mubr.bf16.gmra.mrb[0].mxu0 %v384
        %v643 = vpop.f32.mrb[0].mxu0
        %v644 = vadd.f32 0.0, %v643
        %v645 = vpop.f32.mrb[0].mxu0
        %v646 = vpop.f32.mrb[0].mxu0
        %v647 = vadd.f32 0.0, %v646
        %v648 = vpop.f32.mrb[0].mxu0
        %649 = vmatprep.mubr.bf16.mxu0 0
        %650 = vmatmul.mubr.bf16.gmra.mrb[0].mxu0 %v387
        %v651 = vpop.f32.mrb[0].mxu0
        %v652 = vadd.f32 0.0, %v651
        %v653 = vpop.f32.mrb[0].mxu0
        %v654 = vpop.f32.mrb[0].mxu0
        %v655 = vadd.f32 0.0, %v654
        %v656 = vpop.f32.mrb[0].mxu0
        %657 = vmatprep.mubr.bf16.mxu0 0
        %658 = vmatmul.mubr.bf16.gmra.mrb[0].mxu0 %v390
        %v659 = vpop.f32.mrb[0].mxu0
        %v660 = vadd.f32 0.0, %v659
        %v661 = vpop.f32.mrb[0].mxu0
        %v662 = vpop.f32.mrb[0].mxu0
        %v663 = vadd.f32 0.0, %v662
        %v664 = vpop.f32.mrb[0].mxu0
        %665 = vmatprep.mubr.bf16.mxu0 0
        %666 = vmatmul.mubr.bf16.gmra.mrb[0].mxu0 %v393
        %v667 = vpop.f32.mrb[0].mxu0
        %v668 = vadd.f32 0.0, %v667
        %v669 = vpop.f32.mrb[0].mxu0
        %v670 = vpop.f32.mrb[0].mxu0
        %v671 = vadd.f32 0.0, %v670
        %v672 = vpop.f32.mrb[0].mxu0
        %673 = vmatprep.mubr.bf16.mxu0 0
        %674 = vmatmul.mubr.bf16.gmra.mrb[0].mxu0 %v396
        %v675 = vpop.f32.mrb[0].mxu0
        %v676 = vadd.f32 0.0, %v675
        %v677 = vpop.f32.mrb[0].mxu0
        %v678 = vpop.f32.mrb[0].mxu0
        %v679 = vadd.f32 0.0, %v678
        %v680 = vpop.f32.mrb[0].mxu0
        %681 = vmatprep.mubr.bf16.mxu0 0
        %682 = vmatmul.mubr.bf16.gmra.mrb[0].mxu0 %v399
        %v683 = vpop.f32.mrb[0].mxu0
        %v684 = vadd.f32 0.0, %v683
        %v685 = vpop.f32.mrb[0].mxu0
        %v686 = vpop.f32.mrb[0].mxu0
        %v687 = vadd.f32 0.0, %v686
        %v688 = vpop.f32.mrb[0].mxu0
        %689 = vdwg.mxu0
        %v690 = vmul.f32 %v436, 0.5
        %v691 = vmul.f32 %v439, 0.5
        %v692 = vmul.f32 %v444, 0.5
        %v693 = vmul.f32 %v447, 0.5
        %v694 = vmul.f32 %v452, 0.5
        %v695 = vmul.f32 %v455, 0.5
        %v696 = vmul.f32 %v460, 0.5
        %v697 = vmul.f32 %v463, 0.5
        %v698 = vmul.f32 %v468, 0.5
        %v699 = vmul.f32 %v471, 0.5
        %v700 = vmul.f32 %v476, 0.5
        %v701 = vmul.f32 %v479, 0.5
        %v702 = vmul.f32 %v484, 0.5
        %v703 = vmul.f32 %v487, 0.5
        %v704 = vmul.f32 %v492, 0.5
        %v705 = vmul.f32 %v495, 0.5
        %v706 = vmul.f32 %v500, 0.5
        %v707 = vmul.f32 %v503, 0.5
        %v708 = vmul.f32 %v508, 0.5
        %v709 = vmul.f32 %v511, 0.5
        %v710 = vmul.f32 %v516, 0.5
        %v711 = vmul.f32 %v519, 0.5
        %v712 = vmul.f32 %v524, 0.5
        %v713 = vmul.f32 %v527, 0.5
        %v714 = vmul.f32 %v532, 0.5
        %v715 = vmul.f32 %v535, 0.5
        %v716 = vmul.f32 %v540, 0.5
        %v717 = vmul.f32 %v543, 0.5
        %v718 = vmul.f32 %v548, 0.5
        %v719 = vmul.f32 %v551, 0.5
        %v720 = vmul.f32 %v556, 0.5
        %v721 = vmul.f32 %v559, 0.5
        %v722 = vmul.f32 %v564, 0.5
        %v723 = vmul.f32 %v567, 0.5
        %v724 = vmul.f32 %v572, 0.5
        %v725 = vmul.f32 %v575, 0.5
        %v726 = vmul.f32 %v580, 0.5
        %v727 = vmul.f32 %v583, 0.5
        %v728 = vmul.f32 %v588, 0.5
        %v729 = vmul.f32 %v591, 0.5
        %v730 = vmul.f32 %v596, 0.5
        %v731 = vmul.f32 %v599, 0.5
        %v732 = vmul.f32 %v604, 0.5
        %v733 = vmul.f32 %v607, 0.5
        %v734 = vmul.f32 %v612, 0.5
        %v735 = vmul.f32 %v615, 0.5
        %v736 = vmul.f32 %v620, 0.5
        %v737 = vmul.f32 %v623, 0.5
        %v738 = vmul.f32 %v628, 0.5
        %v739 = vmul.f32 %v631, 0.5
        %v740 = vmul.f32 %v636, 0.5
        %v741 = vmul.f32 %v639, 0.5
        %v742 = vmul.f32 %v644, 0.5
        %v743 = vmul.f32 %v647, 0.5
        %v744 = vmul.f32 %v652, 0.5
        %v745 = vmul.f32 %v655, 0.5
        %v746 = vmul.f32 %v660, 0.5
        %v747 = vmul.f32 %v663, 0.5
        %v748 = vmul.f32 %v668, 0.5
        %v749 = vmul.f32 %v671, 0.5
        %v750 = vmul.f32 %v676, 0.5
        %v751 = vmul.f32 %v679, 0.5
        %v752 = vmul.f32 %v684, 0.5
        %v753 = vmul.f32 %v687, 0.5
        %v754 = vmul.f32 %v436, 0.044715
        %v755 = vmul.f32 %v439, 0.044715
        %v756 = vmul.f32 %v444, 0.044715
        %v757 = vmul.f32 %v447, 0.044715
        %v758 = vmul.f32 %v452, 0.044715
        %v759 = vmul.f32 %v455, 0.044715
        %v760 = vmul.f32 %v460, 0.044715
        %v761 = vmul.f32 %v463, 0.044715
        %v762 = vmul.f32 %v468, 0.044715
        %v763 = vmul.f32 %v471, 0.044715
        %v764 = vmul.f32 %v476, 0.044715
        %v765 = vmul.f32 %v479, 0.044715
        %v766 = vmul.f32 %v484, 0.044715
        %v767 = vmul.f32 %v487, 0.044715
        %v768 = vmul.f32 %v492, 0.044715
        %v769 = vmul.f32 %v495, 0.044715
        %v770 = vmul.f32 %v500, 0.044715
        %v771 = vmul.f32 %v503, 0.044715
        %v772 = vmul.f32 %v508, 0.044715
        %v773 = vmul.f32 %v511, 0.044715
        %v774 = vmul.f32 %v516, 0.044715
        %v775 = vmul.f32 %v519, 0.044715
        %v776 = vmul.f32 %v524, 0.044715
        %v777 = vmul.f32 %v527, 0.044715
        %v778 = vmul.f32 %v532, 0.044715
        %v779 = vmul.f32 %v535, 0.044715
        %v780 = vmul.f32 %v540, 0.044715
        %v781 = vmul.f32 %v543, 0.044715
        %v782 = vmul.f32 %v548, 0.044715
        %v783 = vmul.f32 %v551, 0.044715
        %v784 = vmul.f32 %v556, 0.044715
        %v785 = vmul.f32 %v559, 0.044715
        %v786 = vmul.f32 %v564, 0.044715
        %v787 = vmul.f32 %v567, 0.044715
        %v788 = vmul.f32 %v572, 0.044715
        %v789 = vmul.f32 %v575, 0.044715
        %v790 = vmul.f32 %v580, 0.044715
        %v791 = vmul.f32 %v583, 0.044715
        %v792 = vmul.f32 %v588, 0.044715
        %v793 = vmul.f32 %v591, 0.044715
        %v794 = vmul.f32 %v596, 0.044715
        %v795 = vmul.f32 %v599, 0.044715
        %v796 = vmul.f32 %v604, 0.044715
        %v797 = vmul.f32 %v607, 0.044715
        %v798 = vmul.f32 %v612, 0.044715
        %v799 = vmul.f32 %v615, 0.044715
        %v800 = vmul.f32 %v620, 0.044715
        %v801 = vmul.f32 %v623, 0.044715
        %v802 = vmul.f32 %v628, 0.044715
        %v803 = vmul.f32 %v631, 0.044715
        %v804 = vmul.f32 %v636, 0.044715
        %v805 = vmul.f32 %v639, 0.044715
        %v806 = vmul.f32 %v644, 0.044715
        %v807 = vmul.f32 %v647, 0.044715
        %v808 = vmul.f32 %v652, 0.044715
        %v809 = vmul.f32 %v655, 0.044715
        %v810 = vmul.f32 %v660, 0.044715
        %v811 = vmul.f32 %v663, 0.044715
        %v812 = vmul.f32 %v668, 0.044715
        %v813 = vmul.f32 %v671, 0.044715
        %v814 = vmul.f32 %v676, 0.044715
        %v815 = vmul.f32 %v679, 0.044715
        %v816 = vmul.f32 %v684, 0.044715
        %v817 = vmul.f32 %v687, 0.044715
        %v818 = vmul.f32 %v754, %v436
        %v819 = vmul.f32 %v755, %v439
        %v820 = vmul.f32 %v756, %v444
        %v821 = vmul.f32 %v757, %v447
        %v822 = vmul.f32 %v758, %v452
        %v823 = vmul.f32 %v759, %v455
        %v824 = vmul.f32 %v760, %v460
        %v825 = vmul.f32 %v761, %v463
        %v826 = vmul.f32 %v762, %v468
        %v827 = vmul.f32 %v763, %v471
        %v828 = vmul.f32 %v764, %v476
        %v829 = vmul.f32 %v765, %v479
        %v830 = vmul.f32 %v766, %v484
        %v831 = vmul.f32 %v767, %v487
        %v832 = vmul.f32 %v768, %v492
        %v833 = vmul.f32 %v769, %v495
        %v834 = vmul.f32 %v770, %v500
        %v835 = vmul.f32 %v771, %v503
        %v836 = vmul.f32 %v772, %v508
        %v837 = vmul.f32 %v773, %v511
        %v838 = vmul.f32 %v774, %v516
        %v839 = vmul.f32 %v775, %v519
        %v840 = vmul.f32 %v776, %v524
        %v841 = vmul.f32 %v777, %v527
        %v842 = vmul.f32 %v778, %v532
        %v843 = vmul.f32 %v779, %v535
        %v844 = vmul.f32 %v780, %v540
        %v845 = vmul.f32 %v781, %v543
        %v846 = vmul.f32 %v782, %v548
        %v847 = vmul.f32 %v783, %v551
        %v848 = vmul.f32 %v784, %v556
        %v849 = vmul.f32 %v785, %v559
        %v850 = vmul.f32 %v786, %v564
        %v851 = vmul.f32 %v787, %v567
        %v852 = vmul.f32 %v788, %v572
        %v853 = vmul.f32 %v789, %v575
        %v854 = vmul.f32 %v790, %v580
        %v855 = vmul.f32 %v791, %v583
        %v856 = vmul.f32 %v792, %v588
        %v857 = vmul.f32 %v793, %v591
        %v858 = vmul.f32 %v794, %v596
        %v859 = vmul.f32 %v795, %v599
        %v860 = vmul.f32 %v796, %v604
        %v861 = vmul.f32 %v797, %v607
        %v862 = vmul.f32 %v798, %v612
        %v863 = vmul.f32 %v799, %v615
        %v864 = vmul.f32 %v800, %v620
        %v865 = vmul.f32 %v801, %v623
        %v866 = vmul.f32 %v802, %v628
        %v867 = vmul.f32 %v803, %v631
        %v868 = vmul.f32 %v804, %v636
        %v869 = vmul.f32 %v805, %v639
        %v870 = vmul.f32 %v806, %v644
        %v871 = vmul.f32 %v807, %v647
        %v872 = vmul.f32 %v808, %v652
        %v873 = vmul.f32 %v809, %v655
        %v874 = vmul.f32 %v810, %v660
        %v875 = vmul.f32 %v811, %v663
        %v876 = vmul.f32 %v812, %v668
        %v877 = vmul.f32 %v813, %v671
        %v878 = vmul.f32 %v814, %v676
        %v879 = vmul.f32 %v815, %v679
        %v880 = vmul.f32 %v816, %v684
        %v881 = vmul.f32 %v817, %v687
        %v882 = vmul.f32 %v818, %v436
        %v883 = vmul.f32 %v819, %v439
        %v884 = vmul.f32 %v820, %v444
        %v885 = vmul.f32 %v821, %v447
        %v886 = vmul.f32 %v822, %v452
        %v887 = vmul.f32 %v823, %v455
        %v888 = vmul.f32 %v824, %v460
        %v889 = vmul.f32 %v825, %v463
        %v890 = vmul.f32 %v826, %v468
        %v891 = vmul.f32 %v827, %v471
        %v892 = vmul.f32 %v828, %v476
        %v893 = vmul.f32 %v829, %v479
        %v894 = vmul.f32 %v830, %v484
        %v895 = vmul.f32 %v831, %v487
        %v896 = vmul.f32 %v832, %v492
        %v897 = vmul.f32 %v833, %v495
        %v898 = vmul.f32 %v834, %v500
        %v899 = vmul.f32 %v835, %v503
        %v900 = vmul.f32 %v836, %v508
        %v901 = vmul.f32 %v837, %v511
        %v902 = vmul.f32 %v838, %v516
        %v903 = vmul.f32 %v839, %v519
        %v904 = vmul.f32 %v840, %v524
        %v905 = vmul.f32 %v841, %v527
        %v906 = vmul.f32 %v842, %v532
        %v907 = vmul.f32 %v843, %v535
        %v908 = vmul.f32 %v844, %v540
        %v909 = vmul.f32 %v845, %v543
        %v910 = vmul.f32 %v846, %v548
        %v911 = vmul.f32 %v847, %v551
        %v912 = vmul.f32 %v848, %v556
        %v913 = vmul.f32 %v849, %v559
        %v914 = vmul.f32 %v850, %v564
        %v915 = vmul.f32 %v851, %v567
        %v916 = vmul.f32 %v852, %v572
        %v917 = vmul.f32 %v853, %v575
        %v918 = vmul.f32 %v854, %v580
        %v919 = vmul.f32 %v855, %v583
        %v920 = vmul.f32 %v856, %v588
        %v921 = vmul.f32 %v857, %v591
        %v922 = vmul.f32 %v858, %v596
        %v923 = vmul.f32 %v859, %v599
        %v924 = vmul.f32 %v860, %v604
        %v925 = vmul.f32 %v861, %v607
        %v926 = vmul.f32 %v862, %v612
        %v927 = vmul.f32 %v863, %v615
        %v928 = vmul.f32 %v864, %v620
        %v929 = vmul.f32 %v865, %v623
        %v930 = vmul.f32 %v866, %v628
        %v931 = vmul.f32 %v867, %v631
        %v932 = vmul.f32 %v868, %v636
        %v933 = vmul.f32 %v869, %v639
        %v934 = vmul.f32 %v870, %v644
        %v935 = vmul.f32 %v871, %v647
        %v936 = vmul.f32 %v872, %v652
        %v937 = vmul.f32 %v873, %v655
        %v938 = vmul.f32 %v874, %v660
        %v939 = vmul.f32 %v875, %v663
        %v940 = vmul.f32 %v876, %v668
        %v941 = vmul.f32 %v877, %v671
        %v942 = vmul.f32 %v878, %v676
        %v943 = vmul.f32 %v879, %v679
        %v944 = vmul.f32 %v880, %v684
        %v945 = vmul.f32 %v881, %v687
        %v946 = vadd.f32 %v436, %v882
        %v947 = vadd.f32 %v439, %v883
        %v948 = vadd.f32 %v444, %v884
        %v949 = vadd.f32 %v447, %v885
        %v950 = vadd.f32 %v452, %v886
        %v951 = vadd.f32 %v455, %v887
        %v952 = vadd.f32 %v460, %v888
        %v953 = vadd.f32 %v463, %v889
        %v954 = vadd.f32 %v468, %v890
        %v955 = vadd.f32 %v471, %v891
        %v956 = vadd.f32 %v476, %v892
        %v957 = vadd.f32 %v479, %v893
        %v958 = vadd.f32 %v484, %v894
        %v959 = vadd.f32 %v487, %v895
        %v960 = vadd.f32 %v492, %v896
        %v961 = vadd.f32 %v495, %v897
        %v962 = vadd.f32 %v500, %v898
        %v963 = vadd.f32 %v503, %v899
        %v964 = vadd.f32 %v508, %v900
        %v965 = vadd.f32 %v511, %v901
        %v966 = vadd.f32 %v516, %v902
        %v967 = vadd.f32 %v519, %v903
        %v968 = vadd.f32 %v524, %v904
        %v969 = vadd.f32 %v527, %v905
        %v970 = vadd.f32 %v532, %v906
        %v971 = vadd.f32 %v535, %v907
        %v972 = vadd.f32 %v540, %v908
        %v973 = vadd.f32 %v543, %v909
        %v974 = vadd.f32 %v548, %v910
        %v975 = vadd.f32 %v551, %v911
        %v976 = vadd.f32 %v556, %v912
        %v977 = vadd.f32 %v559, %v913
        %v978 = vadd.f32 %v564, %v914
        %v979 = vadd.f32 %v567, %v915
        %v980 = vadd.f32 %v572, %v916
        %v981 = vadd.f32 %v575, %v917
        %v982 = vadd.f32 %v580, %v918
        %v983 = vadd.f32 %v583, %v919
        %v984 = vadd.f32 %v588, %v920
        %v985 = vadd.f32 %v591, %v921
        %v986 = vadd.f32 %v596, %v922
        %v987 = vadd.f32 %v599, %v923
        %v988 = vadd.f32 %v604, %v924
        %v989 = vadd.f32 %v607, %v925
        %v990 = vadd.f32 %v612, %v926
        %v991 = vadd.f32 %v615, %v927
        %v992 = vadd.f32 %v620, %v928
        %v993 = vadd.f32 %v623, %v929
        %v994 = vadd.f32 %v628, %v930
        %v995 = vadd.f32 %v631, %v931
        %v996 = vadd.f32 %v636, %v932
        %v997 = vadd.f32 %v639, %v933
        %v998 = vadd.f32 %v644, %v934
        %v999 = vadd.f32 %v647, %v935
        %v1000 = vadd.f32 %v652, %v936
        %v1001 = vadd.f32 %v655, %v937
        %v1002 = vadd.f32 %v660, %v938
        %v1003 = vadd.f32 %v663, %v939
        %v1004 = vadd.f32 %v668, %v940
        %v1005 = vadd.f32 %v671, %v941
        %v1006 = vadd.f32 %v676, %v942
        %v1007 = vadd.f32 %v679, %v943
        %v1008 = vadd.f32 %v684, %v944
        %v1009 = vadd.f32 %v687, %v945
        %v1010 = vmul.f32 %v946, 0.7978846
        %v1011 = vmul.f32 %v947, 0.7978846
        %v1012 = vmul.f32 %v948, 0.7978846
        %v1013 = vmul.f32 %v949, 0.7978846
        %v1014 = vmul.f32 %v950, 0.7978846
        %v1015 = vmul.f32 %v951, 0.7978846
        %v1016 = vmul.f32 %v952, 0.7978846
        %v1017 = vmul.f32 %v953, 0.7978846
        %v1018 = vmul.f32 %v954, 0.7978846
        %v1019 = vmul.f32 %v955, 0.7978846
        %v1020 = vmul.f32 %v956, 0.7978846
        %v1021 = vmul.f32 %v957, 0.7978846
        %v1022 = vmul.f32 %v958, 0.7978846
        %v1023 = vmul.f32 %v959, 0.7978846
        %v1024 = vmul.f32 %v960, 0.7978846
        %v1025 = vmul.f32 %v961, 0.7978846
        %v1026 = vmul.f32 %v962, 0.7978846
        %v1027 = vmul.f32 %v963, 0.7978846
        %v1028 = vmul.f32 %v964, 0.7978846
        %v1029 = vmul.f32 %v965, 0.7978846
        %v1030 = vmul.f32 %v966, 0.7978846
        %v1031 = vmul.f32 %v967, 0.7978846
        %v1032 = vmul.f32 %v968, 0.7978846
        %v1033 = vmul.f32 %v969, 0.7978846
        %v1034 = vmul.f32 %v970, 0.7978846
        %v1035 = vmul.f32 %v971, 0.7978846
        %v1036 = vmul.f32 %v972, 0.7978846
        %v1037 = vmul.f32 %v973, 0.7978846
        %v1038 = vmul.f32 %v974, 0.7978846
        %v1039 = vmul.f32 %v975, 0.7978846
        %v1040 = vmul.f32 %v976, 0.7978846
        %v1041 = vmul.f32 %v977, 0.7978846
        %v1042 = vmul.f32 %v978, 0.7978846
        %v1043 = vmul.f32 %v979, 0.7978846
        %v1044 = vmul.f32 %v980, 0.7978846
        %v1045 = vmul.f32 %v981, 0.7978846
        %v1046 = vmul.f32 %v982, 0.7978846
        %v1047 = vmul.f32 %v983, 0.7978846
        %v1048 = vmul.f32 %v984, 0.7978846
        %v1049 = vmul.f32 %v985, 0.7978846
        %v1050 = vmul.f32 %v986, 0.7978846
        %v1051 = vmul.f32 %v987, 0.7978846
        %v1052 = vmul.f32 %v988, 0.7978846
        %v1053 = vmul.f32 %v989, 0.7978846
        %v1054 = vmul.f32 %v990, 0.7978846
        %v1055 = vmul.f32 %v991, 0.7978846
        %v1056 = vmul.f32 %v992, 0.7978846
        %v1057 = vmul.f32 %v993, 0.7978846
        %v1058 = vmul.f32 %v994, 0.7978846
        %v1059 = vmul.f32 %v995, 0.7978846
        %v1060 = vmul.f32 %v996, 0.7978846
        %v1061 = vmul.f32 %v997, 0.7978846
        %v1062 = vmul.f32 %v998, 0.7978846
        %v1063 = vmul.f32 %v999, 0.7978846
        %v1064 = vmul.f32 %v1000, 0.7978846
        %v1065 = vmul.f32 %v1001, 0.7978846
        %v1066 = vmul.f32 %v1002, 0.7978846
        %v1067 = vmul.f32 %v1003, 0.7978846
        %v1068 = vmul.f32 %v1004, 0.7978846
        %v1069 = vmul.f32 %v1005, 0.7978846
        %v1070 = vmul.f32 %v1006, 0.7978846
        %v1071 = vmul.f32 %v1007, 0.7978846
        %v1072 = vmul.f32 %v1008, 0.7978846
        %v1073 = vmul.f32 %v1009, 0.7978846
        %v1074 = vtanh.pop %v1010
        %v1075 = vtanh.pop %v1011
        %v1076 = vtanh.pop %v1012
        %v1077 = vtanh.pop %v1013
        %v1078 = vtanh.pop %v1014
        %v1079 = vtanh.pop %v1015
        %v1080 = vtanh.pop %v1016
        %v1081 = vtanh.pop %v1017
        %v1082 = vtanh.pop %v1018
        %v1083 = vtanh.pop %v1019
        %v1084 = vtanh.pop %v1020
        %v1085 = vtanh.pop %v1021
        %v1086 = vtanh.pop %v1022
        %v1087 = vtanh.pop %v1023
        %v1088 = vtanh.pop %v1024
        %v1089 = vtanh.pop %v1025
        %v1090 = vtanh.pop %v1026
        %v1091 = vtanh.pop %v1027
        %v1092 = vtanh.pop %v1028
        %v1093 = vtanh.pop %v1029
        %v1094 = vtanh.pop %v1030
        %v1095 = vtanh.pop %v1031
        %v1096 = vtanh.pop %v1032
        %v1097 = vtanh.pop %v1033
        %v1098 = vtanh.pop %v1034
        %v1099 = vtanh.pop %v1035
        %v1100 = vtanh.pop %v1036
        %v1101 = vtanh.pop %v1037
        %v1102 = vtanh.pop %v1038
        %v1103 = vtanh.pop %v1039
        %v1104 = vtanh.pop %v1040
        %v1105 = vtanh.pop %v1041
        %v1106 = vtanh.pop %v1042
        %v1107 = vtanh.pop %v1043
        %v1108 = vtanh.pop %v1044
        %v1109 = vtanh.pop %v1045
        %v1110 = vtanh.pop %v1046
        %v1111 = vtanh.pop %v1047
        %v1112 = vtanh.pop %v1048
        %v1113 = vtanh.pop %v1049
        %v1114 = vtanh.pop %v1050
        %v1115 = vtanh.pop %v1051
        %v1116 = vtanh.pop %v1052
        %v1117 = vtanh.pop %v1053
        %v1118 = vtanh.pop %v1054
        %v1119 = vtanh.pop %v1055
        %v1120 = vtanh.pop %v1056
        %v1121 = vtanh.pop %v1057
        %v1122 = vtanh.pop %v1058
        %v1123 = vtanh.pop %v1059
        %v1124 = vtanh.pop %v1060
        %v1125 = vtanh.pop %v1061
        %v1126 = vtanh.pop %v1062
        %v1127 = vtanh.pop %v1063
        %v1128 = vtanh.pop %v1064
        %v1129 = vtanh.pop %v1065
        %v1130 = vtanh.pop %v1066
        %v1131 = vtanh.pop %v1067
        %v1132 = vtanh.pop %v1068
        %v1133 = vtanh.pop %v1069
        %v1134 = vtanh.pop %v1070
        %v1135 = vtanh.pop %v1071
        %v1136 = vtanh.pop %v1072
        %v1137 = vtanh.pop %v1073
        %v1138 = vadd.f32 %v1074, 1.0
        %v1139 = vadd.f32 %v1075, 1.0
        %v1140 = vadd.f32 %v1076, 1.0
        %v1141 = vadd.f32 %v1077, 1.0
        %v1142 = vadd.f32 %v1078, 1.0
        %v1143 = vadd.f32 %v1079, 1.0
        %v1144 = vadd.f32 %v1080, 1.0
        %v1145 = vadd.f32 %v1081, 1.0
        %v1146 = vadd.f32 %v1082, 1.0
        %v1147 = vadd.f32 %v1083, 1.0
        %v1148 = vadd.f32 %v1084, 1.0
        %v1149 = vadd.f32 %v1085, 1.0
        %v1150 = vadd.f32 %v1086, 1.0
        %v1151 = vadd.f32 %v1087, 1.0
        %v1152 = vadd.f32 %v1088, 1.0
        %v1153 = vadd.f32 %v1089, 1.0
        %v1154 = vadd.f32 %v1090, 1.0
        %v1155 = vadd.f32 %v1091, 1.0
        %v1156 = vadd.f32 %v1092, 1.0
        %v1157 = vadd.f32 %v1093, 1.0
        %v1158 = vadd.f32 %v1094, 1.0
        %v1159 = vadd.f32 %v1095, 1.0
        %v1160 = vadd.f32 %v1096, 1.0
        %v1161 = vadd.f32 %v1097, 1.0
        %v1162 = vadd.f32 %v1098, 1.0
        %v1163 = vadd.f32 %v1099, 1.0
        %v1164 = vadd.f32 %v1100, 1.0
        %v1165 = vadd.f32 %v1101, 1.0
        %v1166 = vadd.f32 %v1102, 1.0
        %v1167 = vadd.f32 %v1103, 1.0
        %v1168 = vadd.f32 %v1104, 1.0
        %v1169 = vadd.f32 %v1105, 1.0
        %v1170 = vadd.f32 %v1106, 1.0
        %v1171 = vadd.f32 %v1107, 1.0
        %v1172 = vadd.f32 %v1108, 1.0
        %v1173 = vadd.f32 %v1109, 1.0
        %v1174 = vadd.f32 %v1110, 1.0
        %v1175 = vadd.f32 %v1111, 1.0
        %v1176 = vadd.f32 %v1112, 1.0
        %v1177 = vadd.f32 %v1113, 1.0
        %v1178 = vadd.f32 %v1114, 1.0
        %v1179 = vadd.f32 %v1115, 1.0
        %v1180 = vadd.f32 %v1116, 1.0
        %v1181 = vadd.f32 %v1117, 1.0
        %v1182 = vadd.f32 %v1118, 1.0
        %v1183 = vadd.f32 %v1119, 1.0
        %v1184 = vadd.f32 %v1120, 1.0
        %v1185 = vadd.f32 %v1121, 1.0
        %v1186 = vadd.f32 %v1122, 1.0
        %v1187 = vadd.f32 %v1123, 1.0
        %v1188 = vadd.f32 %v1124, 1.0
        %v1189 = vadd.f32 %v1125, 1.0
        %v1190 = vadd.f32 %v1126, 1.0
        %v1191 = vadd.f32 %v1127, 1.0
        %v1192 = vadd.f32 %v1128, 1.0
        %v1193 = vadd.f32 %v1129, 1.0
        %v1194 = vadd.f32 %v1130, 1.0
        %v1195 = vadd.f32 %v1131, 1.0
        %v1196 = vadd.f32 %v1132, 1.0
        %v1197 = vadd.f32 %v1133, 1.0
        %v1198 = vadd.f32 %v1134, 1.0
        %v1199 = vadd.f32 %v1135, 1.0
        %v1200 = vadd.f32 %v1136, 1.0
        %v1201 = vadd.f32 %v1137, 1.0
        %v1202 = vmul.f32 %v690, %v1138
        %v1203 = vmul.f32 %v691, %v1139
        %v1204 = vmul.f32 %v692, %v1140
        %v1205 = vmul.f32 %v693, %v1141
        %v1206 = vmul.f32 %v694, %v1142
        %v1207 = vmul.f32 %v695, %v1143
        %v1208 = vmul.f32 %v696, %v1144
        %v1209 = vmul.f32 %v697, %v1145
        %v1210 = vmul.f32 %v698, %v1146
        %v1211 = vmul.f32 %v699, %v1147
        %v1212 = vmul.f32 %v700, %v1148
        %v1213 = vmul.f32 %v701, %v1149
        %v1214 = vmul.f32 %v702, %v1150
        %v1215 = vmul.f32 %v703, %v1151
        %v1216 = vmul.f32 %v704, %v1152
        %v1217 = vmul.f32 %v705, %v1153
        %v1218 = vmul.f32 %v706, %v1154
        %v1219 = vmul.f32 %v707, %v1155
        %v1220 = vmul.f32 %v708, %v1156
        %v1221 = vmul.f32 %v709, %v1157
        %v1222 = vmul.f32 %v710, %v1158
        %v1223 = vmul.f32 %v711, %v1159
        %v1224 = vmul.f32 %v712, %v1160
        %v1225 = vmul.f32 %v713, %v1161
        %v1226 = vmul.f32 %v714, %v1162
        %v1227 = vmul.f32 %v715, %v1163
        %v1228 = vmul.f32 %v716, %v1164
        %v1229 = vmul.f32 %v717, %v1165
        %v1230 = vmul.f32 %v718, %v1166
        %v1231 = vmul.f32 %v719, %v1167
        %v1232 = vmul.f32 %v720, %v1168
        %v1233 = vmul.f32 %v721, %v1169
        %v1234 = vmul.f32 %v722, %v1170
        %v1235 = vmul.f32 %v723, %v1171
        %v1236 = vmul.f32 %v724, %v1172
        %v1237 = vmul.f32 %v725, %v1173
        %v1238 = vmul.f32 %v726, %v1174
        %v1239 = vmul.f32 %v727, %v1175
        %v1240 = vmul.f32 %v728, %v1176
        %v1241 = vmul.f32 %v729, %v1177
        %v1242 = vmul.f32 %v730, %v1178
        %v1243 = vmul.f32 %v731, %v1179
        %v1244 = vmul.f32 %v732, %v1180
        %v1245 = vmul.f32 %v733, %v1181
        %v1246 = vmul.f32 %v734, %v1182
        %v1247 = vmul.f32 %v735, %v1183
        %v1248 = vmul.f32 %v736, %v1184
        %v1249 = vmul.f32 %v737, %v1185
        %v1250 = vmul.f32 %v738, %v1186
        %v1251 = vmul.f32 %v739, %v1187
        %v1252 = vmul.f32 %v740, %v1188
        %v1253 = vmul.f32 %v741, %v1189
        %v1254 = vmul.f32 %v742, %v1190
        %v1255 = vmul.f32 %v743, %v1191
        %v1256 = vmul.f32 %v744, %v1192
        %v1257 = vmul.f32 %v745, %v1193
        %v1258 = vmul.f32 %v746, %v1194
        %v1259 = vmul.f32 %v747, %v1195
        %v1260 = vmul.f32 %v748, %v1196
        %v1261 = vmul.f32 %v749, %v1197
        %v1262 = vmul.f32 %v750, %v1198
        %v1263 = vmul.f32 %v751, %v1199
        %v1264 = vmul.f32 %v752, %v1200
        %v1265 = vmul.f32 %v753, %v1201
        %1266 = vadd.xlane.f32.xlu0 %v1202
        %v1267 = vpop.xlane.xlu0 %1266
        %1268 = vadd.xlane.f32.xlu0 %v1203
        %v1269 = vpop.xlane.xlu0 %1268
        %1270 = vadd.xlane.f32.xlu0 %v1204
        %v1271 = vpop.xlane.xlu0 %1270
        %1272 = vadd.xlane.f32.xlu0 %v1205
        %v1273 = vpop.xlane.xlu0 %1272
        %1274 = vadd.xlane.f32.xlu0 %v1206
        %v1275 = vpop.xlane.xlu0 %1274
        %1276 = vadd.xlane.f32.xlu0 %v1207
        %v1277 = vpop.xlane.xlu0 %1276
        %1278 = vadd.xlane.f32.xlu0 %v1208
        %v1279 = vpop.xlane.xlu0 %1278
        %1280 = vadd.xlane.f32.xlu0 %v1209
        %v1281 = vpop.xlane.xlu0 %1280
        %1282 = vadd.xlane.f32.xlu0 %v1210
        %v1283 = vpop.xlane.xlu0 %1282
        %1284 = vadd.xlane.f32.xlu0 %v1211
        %v1285 = vpop.xlane.xlu0 %1284
        %1286 = vadd.xlane.f32.xlu0 %v1212
        %v1287 = vpop.xlane.xlu0 %1286
        %1288 = vadd.xlane.f32.xlu0 %v1213
        %v1289 = vpop.xlane.xlu0 %1288
        %1290 = vadd.xlane.f32.xlu0 %v1214
        %v1291 = vpop.xlane.xlu0 %1290
        %1292 = vadd.xlane.f32.xlu0 %v1215
        %v1293 = vpop.xlane.xlu0 %1292
        %1294 = vadd.xlane.f32.xlu0 %v1216
        %v1295 = vpop.xlane.xlu0 %1294
        %1296 = vadd.xlane.f32.xlu0 %v1217
        %v1297 = vpop.xlane.xlu0 %1296
        %1298 = vadd.xlane.f32.xlu0 %v1218
        %v1299 = vpop.xlane.xlu0 %1298
        %1300 = vadd.xlane.f32.xlu0 %v1219
        %v1301 = vpop.xlane.xlu0 %1300
        %1302 = vadd.xlane.f32.xlu0 %v1220
        %v1303 = vpop.xlane.xlu0 %1302
        %1304 = vadd.xlane.f32.xlu0 %v1221
        %v1305 = vpop.xlane.xlu0 %1304
        %1306 = vadd.xlane.f32.xlu0 %v1222
        %v1307 = vpop.xlane.xlu0 %1306
        %1308 = vadd.xlane.f32.xlu0 %v1223
        %v1309 = vpop.xlane.xlu0 %1308
        %1310 = vadd.xlane.f32.xlu0 %v1224
        %v1311 = vpop.xlane.xlu0 %1310
        %1312 = vadd.xlane.f32.xlu0 %v1225
        %v1313 = vpop.xlane.xlu0 %1312
        %1314 = vadd.xlane.f32.xlu0 %v1226
        %v1315 = vpop.xlane.xlu0 %1314
        %1316 = vadd.xlane.f32.xlu0 %v1227
        %v1317 = vpop.xlane.xlu0 %1316
        %1318 = vadd.xlane.f32.xlu0 %v1228
        %v1319 = vpop.xlane.xlu0 %1318
        %1320 = vadd.xlane.f32.xlu0 %v1229
        %v1321 = vpop.xlane.xlu0 %1320
        %1322 = vadd.xlane.f32.xlu0 %v1230
        %v1323 = vpop.xlane.xlu0 %1322
        %1324 = vadd.xlane.f32.xlu0 %v1231
        %v1325 = vpop.xlane.xlu0 %1324
        %1326 = vadd.xlane.f32.xlu0 %v1232
        %v1327 = vpop.xlane.xlu0 %1326
        %1328 = vadd.xlane.f32.xlu0 %v1233
        %v1329 = vpop.xlane.xlu0 %1328
        %1330 = vadd.xlane.f32.xlu0 %v1234
        %v1331 = vpop.xlane.xlu0 %1330
        %1332 = vadd.xlane.f32.xlu0 %v1235
        %v1333 = vpop.xlane.xlu0 %1332
        %1334 = vadd.xlane.f32.xlu0 %v1236
        %v1335 = vpop.xlane.xlu0 %1334
        %1336 = vadd.xlane.f32.xlu0 %v1237
        %v1337 = vpop.xlane.xlu0 %1336
        %1338 = vadd.xlane.f32.xlu0 %v1238
        %v1339 = vpop.xlane.xlu0 %1338
        %1340 = vadd.xlane.f32.xlu0 %v1239
        %v1341 = vpop.xlane.xlu0 %1340
        %1342 = vadd.xlane.f32.xlu0 %v1240
        %v1343 = vpop.xlane.xlu0 %1342
        %1344 = vadd.xlane.f32.xlu0 %v1241
        %v1345 = vpop.xlane.xlu0 %1344
        %1346 = vadd.xlane.f32.xlu0 %v1242
        %v1347 = vpop.xlane.xlu0 %1346
        %1348 = vadd.xlane.f32.xlu0 %v1243
        %v1349 = vpop.xlane.xlu0 %1348
        %1350 = vadd.xlane.f32.xlu0 %v1244
        %v1351 = vpop.xlane.xlu0 %1350
        %1352 = vadd.xlane.f32.xlu0 %v1245
        %v1353 = vpop.xlane.xlu0 %1352
        %1354 = vadd.xlane.f32.xlu0 %v1246
        %v1355 = vpop.xlane.xlu0 %1354
        %1356 = vadd.xlane.f32.xlu0 %v1247
        %v1357 = vpop.xlane.xlu0 %1356
        %1358 = vadd.xlane.f32.xlu0 %v1248
        %v1359 = vpop.xlane.xlu0 %1358
        %1360 = vadd.xlane.f32.xlu0 %v1249
        %v1361 = vpop.xlane.xlu0 %1360
        %1362 = vadd.xlane.f32.xlu0 %v1250
        %v1363 = vpop.xlane.xlu0 %1362
        %1364 = vadd.xlane.f32.xlu0 %v1251
        %v1365 = vpop.xlane.xlu0 %1364
        %1366 = vadd.xlane.f32.xlu0 %v1252
        %v1367 = vpop.xlane.xlu0 %1366
        %1368 = vadd.xlane.f32.xlu0 %v1253
        %v1369 = vpop.xlane.xlu0 %1368
        %1370 = vadd.xlane.f32.xlu0 %v1254
        %v1371 = vpop.xlane.xlu0 %1370
        %1372 = vadd.xlane.f32.xlu0 %v1255
        %v1373 = vpop.xlane.xlu0 %1372
        %1374 = vadd.xlane.f32.xlu0 %v1256
        %v1375 = vpop.xlane.xlu0 %1374
        %1376 = vadd.xlane.f32.xlu0 %v1257
        %v1377 = vpop.xlane.xlu0 %1376
        %1378 = vadd.xlane.f32.xlu0 %v1258
        %v1379 = vpop.xlane.xlu0 %1378
        %1380 = vadd.xlane.f32.xlu0 %v1259
        %v1381 = vpop.xlane.xlu0 %1380
        %1382 = vadd.xlane.f32.xlu0 %v1260
        %v1383 = vpop.xlane.xlu0 %1382
        %1384 = vadd.xlane.f32.xlu0 %v1261
        %v1385 = vpop.xlane.xlu0 %1384
        %1386 = vadd.xlane.f32.xlu0 %v1262
        %v1387 = vpop.xlane.xlu0 %1386
        %1388 = vadd.xlane.f32.xlu0 %v1263
        %v1389 = vpop.xlane.xlu0 %1388
        %1390 = vadd.xlane.f32.xlu0 %v1264
        %v1391 = vpop.xlane.xlu0 %1390
        %1392 = vadd.xlane.f32.xlu0 %v1265
        %v1393 = vpop.xlane.xlu0 %1392
        %v1394 = vmul.f32 %v1202, %v1202
        %v1395 = vmul.f32 %v1203, %v1203
        %v1396 = vmul.f32 %v1204, %v1204
        %v1397 = vmul.f32 %v1205, %v1205
        %v1398 = vmul.f32 %v1206, %v1206
        %v1399 = vmul.f32 %v1207, %v1207
        %v1400 = vmul.f32 %v1208, %v1208
        %v1401 = vmul.f32 %v1209, %v1209
        %v1402 = vmul.f32 %v1210, %v1210
        %v1403 = vmul.f32 %v1211, %v1211
        %v1404 = vmul.f32 %v1212, %v1212
        %v1405 = vmul.f32 %v1213, %v1213
        %v1406 = vmul.f32 %v1214, %v1214
        %v1407 = vmul.f32 %v1215, %v1215
        %v1408 = vmul.f32 %v1216, %v1216
        %v1409 = vmul.f32 %v1217, %v1217
        %v1410 = vmul.f32 %v1218, %v1218
        %v1411 = vmul.f32 %v1219, %v1219
        %v1412 = vmul.f32 %v1220, %v1220
        %v1413 = vmul.f32 %v1221, %v1221
        %v1414 = vmul.f32 %v1222, %v1222
        %v1415 = vmul.f32 %v1223, %v1223
        %v1416 = vmul.f32 %v1224, %v1224
        %v1417 = vmul.f32 %v1225, %v1225
        %v1418 = vmul.f32 %v1226, %v1226
        %v1419 = vmul.f32 %v1227, %v1227
        %v1420 = vmul.f32 %v1228, %v1228
        %v1421 = vmul.f32 %v1229, %v1229
        %v1422 = vmul.f32 %v1230, %v1230
        %v1423 = vmul.f32 %v1231, %v1231
        %v1424 = vmul.f32 %v1232, %v1232
        %v1425 = vmul.f32 %v1233, %v1233
        %v1426 = vmul.f32 %v1234, %v1234
        %v1427 = vmul.f32 %v1235, %v1235
        %v1428 = vmul.f32 %v1236, %v1236
        %v1429 = vmul.f32 %v1237, %v1237
        %v1430 = vmul.f32 %v1238, %v1238
        %v1431 = vmul.f32 %v1239, %v1239
        %v1432 = vmul.f32 %v1240, %v1240
        %v1433 = vmul.f32 %v1241, %v1241
        %v1434 = vmul.f32 %v1242, %v1242
        %v1435 = vmul.f32 %v1243, %v1243
        %v1436 = vmul.f32 %v1244, %v1244
        %v1437 = vmul.f32 %v1245, %v1245
        %v1438 = vmul.f32 %v1246, %v1246
        %v1439 = vmul.f32 %v1247, %v1247
        %v1440 = vmul.f32 %v1248, %v1248
        %v1441 = vmul.f32 %v1249, %v1249
        %v1442 = vmul.f32 %v1250, %v1250
        %v1443 = vmul.f32 %v1251, %v1251
        %v1444 = vmul.f32 %v1252, %v1252
        %v1445 = vmul.f32 %v1253, %v1253
        %v1446 = vmul.f32 %v1254, %v1254
        %v1447 = vmul.f32 %v1255, %v1255
        %v1448 = vmul.f32 %v1256, %v1256
        %v1449 = vmul.f32 %v1257, %v1257
        %v1450 = vmul.f32 %v1258, %v1258
        %v1451 = vmul.f32 %v1259, %v1259
        %v1452 = vmul.f32 %v1260, %v1260
        %v1453 = vmul.f32 %v1261, %v1261
        %v1454 = vmul.f32 %v1262, %v1262
        %v1455 = vmul.f32 %v1263, %v1263
        %v1456 = vmul.f32 %v1264, %v1264
        %v1457 = vmul.f32 %v1265, %v1265
        %1458 = vadd.xlane.f32.xlu0 %v1394
        %v1459 = vpop.xlane.xlu0 %1458
        %1460 = vadd.xlane.f32.xlu0 %v1395
        %v1461 = vpop.xlane.xlu0 %1460
        %1462 = vadd.xlane.f32.xlu0 %v1396
        %v1463 = vpop.xlane.xlu0 %1462
        %1464 = vadd.xlane.f32.xlu0 %v1397
        %v1465 = vpop.xlane.xlu0 %1464
        %1466 = vadd.xlane.f32.xlu0 %v1398
        %v1467 = vpop.xlane.xlu0 %1466
        %1468 = vadd.xlane.f32.xlu0 %v1399
        %v1469 = vpop.xlane.xlu0 %1468
        %1470 = vadd.xlane.f32.xlu0 %v1400
        %v1471 = vpop.xlane.xlu0 %1470
        %1472 = vadd.xlane.f32.xlu0 %v1401
        %v1473 = vpop.xlane.xlu0 %1472
        %1474 = vadd.xlane.f32.xlu0 %v1402
        %v1475 = vpop.xlane.xlu0 %1474
        %1476 = vadd.xlane.f32.xlu0 %v1403
        %v1477 = vpop.xlane.xlu0 %1476
        %1478 = vadd.xlane.f32.xlu0 %v1404
        %v1479 = vpop.xlane.xlu0 %1478
        %1480 = vadd.xlane.f32.xlu0 %v1405
        %v1481 = vpop.xlane.xlu0 %1480
        %1482 = vadd.xlane.f32.xlu0 %v1406
        %v1483 = vpop.xlane.xlu0 %1482
        %1484 = vadd.xlane.f32.xlu0 %v1407
        %v1485 = vpop.xlane.xlu0 %1484
        %1486 = vadd.xlane.f32.xlu0 %v1408
        %v1487 = vpop.xlane.xlu0 %1486
        %1488 = vadd.xlane.f32.xlu0 %v1409
        %v1489 = vpop.xlane.xlu0 %1488
        %1490 = vadd.xlane.f32.xlu0 %v1410
        %v1491 = vpop.xlane.xlu0 %1490
        %1492 = vadd.xlane.f32.xlu0 %v1411
        %v1493 = vpop.xlane.xlu0 %1492
        %1494 = vadd.xlane.f32.xlu0 %v1412
        %v1495 = vpop.xlane.xlu0 %1494
        %1496 = vadd.xlane.f32.xlu0 %v1413
        %v1497 = vpop.xlane.xlu0 %1496
        %1498 = vadd.xlane.f32.xlu0 %v1414
        %v1499 = vpop.xlane.xlu0 %1498
        %1500 = vadd.xlane.f32.xlu0 %v1415
        %v1501 = vpop.xlane.xlu0 %1500
        %1502 = vadd.xlane.f32.xlu0 %v1416
        %v1503 = vpop.xlane.xlu0 %1502
        %1504 = vadd.xlane.f32.xlu0 %v1417
        %v1505 = vpop.xlane.xlu0 %1504
        %1506 = vadd.xlane.f32.xlu0 %v1418
        %v1507 = vpop.xlane.xlu0 %1506
        %1508 = vadd.xlane.f32.xlu0 %v1419
        %v1509 = vpop.xlane.xlu0 %1508
        %1510 = vadd.xlane.f32.xlu0 %v1420
        %v1511 = vpop.xlane.xlu0 %1510
        %1512 = vadd.xlane.f32.xlu0 %v1421
        %v1513 = vpop.xlane.xlu0 %1512
        %1514 = vadd.xlane.f32.xlu0 %v1422
        %v1515 = vpop.xlane.xlu0 %1514
        %1516 = vadd.xlane.f32.xlu0 %v1423
        %v1517 = vpop.xlane.xlu0 %1516
        %1518 = vadd.xlane.f32.xlu0 %v1424
        %v1519 = vpop.xlane.xlu0 %1518
        %1520 = vadd.xlane.f32.xlu0 %v1425
        %v1521 = vpop.xlane.xlu0 %1520
        %1522 = vadd.xlane.f32.xlu0 %v1426
        %v1523 = vpop.xlane.xlu0 %1522
        %1524 = vadd.xlane.f32.xlu0 %v1427
        %v1525 = vpop.xlane.xlu0 %1524
        %1526 = vadd.xlane.f32.xlu0 %v1428
        %v1527 = vpop.xlane.xlu0 %1526
        %1528 = vadd.xlane.f32.xlu0 %v1429
        %v1529 = vpop.xlane.xlu0 %1528
        %1530 = vadd.xlane.f32.xlu0 %v1430
        %v1531 = vpop.xlane.xlu0 %1530
        %1532 = vadd.xlane.f32.xlu0 %v1431
        %v1533 = vpop.xlane.xlu0 %1532
        %1534 = vadd.xlane.f32.xlu0 %v1432
        %v1535 = vpop.xlane.xlu0 %1534
        %1536 = vadd.xlane.f32.xlu0 %v1433
        %v1537 = vpop.xlane.xlu0 %1536
        %1538 = vadd.xlane.f32.xlu0 %v1434
        %v1539 = vpop.xlane.xlu0 %1538
        %1540 = vadd.xlane.f32.xlu0 %v1435
        %v1541 = vpop.xlane.xlu0 %1540
        %1542 = vadd.xlane.f32.xlu0 %v1436
        %v1543 = vpop.xlane.xlu0 %1542
        %1544 = vadd.xlane.f32.xlu0 %v1437
        %v1545 = vpop.xlane.xlu0 %1544
        %1546 = vadd.xlane.f32.xlu0 %v1438
        %v1547 = vpop.xlane.xlu0 %1546
        %1548 = vadd.xlane.f32.xlu0 %v1439
        %v1549 = vpop.xlane.xlu0 %1548
        %1550 = vadd.xlane.f32.xlu0 %v1440
        %v1551 = vpop.xlane.xlu0 %1550
        %1552 = vadd.xlane.f32.xlu0 %v1441
        %v1553 = vpop.xlane.xlu0 %1552
        %1554 = vadd.xlane.f32.xlu0 %v1442
        %v1555 = vpop.xlane.xlu0 %1554
        %1556 = vadd.xlane.f32.xlu0 %v1443
        %v1557 = vpop.xlane.xlu0 %1556
        %1558 = vadd.xlane.f32.xlu0 %v1444
        %v1559 = vpop.xlane.xlu0 %1558
        %1560 = vadd.xlane.f32.xlu0 %v1445
        %v1561 = vpop.xlane.xlu0 %1560
        %1562 = vadd.xlane.f32.xlu0 %v1446
        %v1563 = vpop.xlane.xlu0 %1562
        %1564 = vadd.xlane.f32.xlu0 %v1447
        %v1565 = vpop.xlane.xlu0 %1564
        %1566 = vadd.xlane.f32.xlu0 %v1448
        %v1567 = vpop.xlane.xlu0 %1566
        %1568 = vadd.xlane.f32.xlu0 %v1449
        %v1569 = vpop.xlane.xlu0 %1568
        %1570 = vadd.xlane.f32.xlu0 %v1450
        %v1571 = vpop.xlane.xlu0 %1570
        %1572 = vadd.xlane.f32.xlu0 %v1451
        %v1573 = vpop.xlane.xlu0 %1572
        %1574 = vadd.xlane.f32.xlu0 %v1452
        %v1575 = vpop.xlane.xlu0 %1574
        %1576 = vadd.xlane.f32.xlu0 %v1453
        %v1577 = vpop.xlane.xlu0 %1576
        %1578 = vadd.xlane.f32.xlu0 %v1454
        %v1579 = vpop.xlane.xlu0 %1578
        %1580 = vadd.xlane.f32.xlu0 %v1455
        %v1581 = vpop.xlane.xlu0 %1580
        %1582 = vadd.xlane.f32.xlu0 %v1456
        %v1583 = vpop.xlane.xlu0 %1582
        %1584 = vadd.xlane.f32.xlu0 %v1457
        %v1585 = vpop.xlane.xlu0 %1584
        %v1586 = vmul.f32 %v1267, 0.03125
        %v1587 = vmul.f32 %v1269, 0.03125
        %v1588 = vmul.f32 %v1271, 0.03125
        %v1589 = vmul.f32 %v1273, 0.03125
        %v1590 = vmul.f32 %v1275, 0.03125
        %v1591 = vmul.f32 %v1277, 0.03125
        %v1592 = vmul.f32 %v1279, 0.03125
        %v1593 = vmul.f32 %v1281, 0.03125
        %v1594 = vmul.f32 %v1283, 0.03125
        %v1595 = vmul.f32 %v1285, 0.03125
        %v1596 = vmul.f32 %v1287, 0.03125
        %v1597 = vmul.f32 %v1289, 0.03125
        %v1598 = vmul.f32 %v1291, 0.03125
        %v1599 = vmul.f32 %v1293, 0.03125
        %v1600 = vmul.f32 %v1295, 0.03125
        %v1601 = vmul.f32 %v1297, 0.03125
        %v1602 = vmul.f32 %v1299, 0.03125
        %v1603 = vmul.f32 %v1301, 0.03125
        %v1604 = vmul.f32 %v1303, 0.03125
        %v1605 = vmul.f32 %v1305, 0.03125
        %v1606 = vmul.f32 %v1307, 0.03125
        %v1607 = vmul.f32 %v1309, 0.03125
        %v1608 = vmul.f32 %v1311, 0.03125
        %v1609 = vmul.f32 %v1313, 0.03125
        %v1610 = vmul.f32 %v1315, 0.03125
        %v1611 = vmul.f32 %v1317, 0.03125
        %v1612 = vmul.f32 %v1319, 0.03125
        %v1613 = vmul.f32 %v1321, 0.03125
        %v1614 = vmul.f32 %v1323, 0.03125
        %v1615 = vmul.f32 %v1325, 0.03125
        %v1616 = vmul.f32 %v1327, 0.03125
        %v1617 = vmul.f32 %v1329, 0.03125
        %v1618 = vmul.f32 %v1331, 0.03125
        %v1619 = vmul.f32 %v1333, 0.03125
        %v1620 = vmul.f32 %v1335, 0.03125
        %v1621 = vmul.f32 %v1337, 0.03125
        %v1622 = vmul.f32 %v1339, 0.03125
        %v1623 = vmul.f32 %v1341, 0.03125
        %v1624 = vmul.f32 %v1343, 0.03125
        %v1625 = vmul.f32 %v1345, 0.03125
        %v1626 = vmul.f32 %v1347, 0.03125
        %v1627 = vmul.f32 %v1349, 0.03125
        %v1628 = vmul.f32 %v1351, 0.03125
        %v1629 = vmul.f32 %v1353, 0.03125
        %v1630 = vmul.f32 %v1355, 0.03125
        %v1631 = vmul.f32 %v1357, 0.03125
        %v1632 = vmul.f32 %v1359, 0.03125
        %v1633 = vmul.f32 %v1361, 0.03125
        %v1634 = vmul.f32 %v1363, 0.03125
        %v1635 = vmul.f32 %v1365, 0.03125
        %v1636 = vmul.f32 %v1367, 0.03125
        %v1637 = vmul.f32 %v1369, 0.03125
        %v1638 = vmul.f32 %v1371, 0.03125
        %v1639 = vmul.f32 %v1373, 0.03125
        %v1640 = vmul.f32 %v1375, 0.03125
        %v1641 = vmul.f32 %v1377, 0.03125
        %v1642 = vmul.f32 %v1379, 0.03125
        %v1643 = vmul.f32 %v1381, 0.03125
        %v1644 = vmul.f32 %v1383, 0.03125
        %v1645 = vmul.f32 %v1385, 0.03125
        %v1646 = vmul.f32 %v1387, 0.03125
        %v1647 = vmul.f32 %v1389, 0.03125
        %v1648 = vmul.f32 %v1391, 0.03125
        %v1649 = vmul.f32 %v1393, 0.03125
        %v1650 = vmul.f32 %v1459, 0.03125
        %v1651 = vmul.f32 %v1461, 0.03125
        %v1652 = vmul.f32 %v1463, 0.03125
        %v1653 = vmul.f32 %v1465, 0.03125
        %v1654 = vmul.f32 %v1467, 0.03125
        %v1655 = vmul.f32 %v1469, 0.03125
        %v1656 = vmul.f32 %v1471, 0.03125
        %v1657 = vmul.f32 %v1473, 0.03125
        %v1658 = vmul.f32 %v1475, 0.03125
        %v1659 = vmul.f32 %v1477, 0.03125
        %v1660 = vmul.f32 %v1479, 0.03125
        %v1661 = vmul.f32 %v1481, 0.03125
        %v1662 = vmul.f32 %v1483, 0.03125
        %v1663 = vmul.f32 %v1485, 0.03125
        %v1664 = vmul.f32 %v1487, 0.03125
        %v1665 = vmul.f32 %v1489, 0.03125
        %v1666 = vmul.f32 %v1491, 0.03125
        %v1667 = vmul.f32 %v1493, 0.03125
        %v1668 = vmul.f32 %v1495, 0.03125
        %v1669 = vmul.f32 %v1497, 0.03125
        %v1670 = vmul.f32 %v1499, 0.03125
        %v1671 = vmul.f32 %v1501, 0.03125
        %v1672 = vmul.f32 %v1503, 0.03125
        %v1673 = vmul.f32 %v1505, 0.03125
        %v1674 = vmul.f32 %v1507, 0.03125
        %v1675 = vmul.f32 %v1509, 0.03125
        %v1676 = vmul.f32 %v1511, 0.03125
        %v1677 = vmul.f32 %v1513, 0.03125
        %v1678 = vmul.f32 %v1515, 0.03125
        %v1679 = vmul.f32 %v1517, 0.03125
        %v1680 = vmul.f32 %v1519, 0.03125
        %v1681 = vmul.f32 %v1521, 0.03125
        %v1682 = vmul.f32 %v1523, 0.03125
        %v1683 = vmul.f32 %v1525, 0.03125
        %v1684 = vmul.f32 %v1527, 0.03125
        %v1685 = vmul.f32 %v1529, 0.03125
        %v1686 = vmul.f32 %v1531, 0.03125
        %v1687 = vmul.f32 %v1533, 0.03125
        %v1688 = vmul.f32 %v1535, 0.03125
        %v1689 = vmul.f32 %v1537, 0.03125
        %v1690 = vmul.f32 %v1539, 0.03125
        %v1691 = vmul.f32 %v1541, 0.03125
        %v1692 = vmul.f32 %v1543, 0.03125
        %v1693 = vmul.f32 %v1545, 0.03125
        %v1694 = vmul.f32 %v1547, 0.03125
        %v1695 = vmul.f32 %v1549, 0.03125
        %v1696 = vmul.f32 %v1551, 0.03125
        %v1697 = vmul.f32 %v1553, 0.03125
        %v1698 = vmul.f32 %v1555, 0.03125
        %v1699 = vmul.f32 %v1557, 0.03125
        %v1700 = vmul.f32 %v1559, 0.03125
        %v1701 = vmul.f32 %v1561, 0.03125
        %v1702 = vmul.f32 %v1563, 0.03125
        %v1703 = vmul.f32 %v1565, 0.03125
        %v1704 = vmul.f32 %v1567, 0.03125
        %v1705 = vmul.f32 %v1569, 0.03125
        %v1706 = vmul.f32 %v1571, 0.03125
        %v1707 = vmul.f32 %v1573, 0.03125
        %v1708 = vmul.f32 %v1575, 0.03125
        %v1709 = vmul.f32 %v1577, 0.03125
        %v1710 = vmul.f32 %v1579, 0.03125
        %v1711 = vmul.f32 %v1581, 0.03125
        %v1712 = vmul.f32 %v1583, 0.03125
        %v1713 = vmul.f32 %v1585, 0.03125
        %v1714 = vmul.f32 %v1586, %v1586
        %v1715 = vmul.f32 %v1587, %v1587
        %v1716 = vmul.f32 %v1588, %v1588
        %v1717 = vmul.f32 %v1589, %v1589
        %v1718 = vmul.f32 %v1590, %v1590
        %v1719 = vmul.f32 %v1591, %v1591
        %v1720 = vmul.f32 %v1592, %v1592
        %v1721 = vmul.f32 %v1593, %v1593
        %v1722 = vmul.f32 %v1594, %v1594
        %v1723 = vmul.f32 %v1595, %v1595
        %v1724 = vmul.f32 %v1596, %v1596
        %v1725 = vmul.f32 %v1597, %v1597
        %v1726 = vmul.f32 %v1598, %v1598
        %v1727 = vmul.f32 %v1599, %v1599
        %v1728 = vmul.f32 %v1600, %v1600
        %v1729 = vmul.f32 %v1601, %v1601
        %v1730 = vmul.f32 %v1602, %v1602
        %v1731 = vmul.f32 %v1603, %v1603
        %v1732 = vmul.f32 %v1604, %v1604
        %v1733 = vmul.f32 %v1605, %v1605
        %v1734 = vmul.f32 %v1606, %v1606
        %v1735 = vmul.f32 %v1607, %v1607
        %v1736 = vmul.f32 %v1608, %v1608
        %v1737 = vmul.f32 %v1609, %v1609
        %v1738 = vmul.f32 %v1610, %v1610
        %v1739 = vmul.f32 %v1611, %v1611
        %v1740 = vmul.f32 %v1612, %v1612
        %v1741 = vmul.f32 %v1613, %v1613
        %v1742 = vmul.f32 %v1614, %v1614
        %v1743 = vmul.f32 %v1615, %v1615
        %v1744 = vmul.f32 %v1616, %v1616
        %v1745 = vmul.f32 %v1617, %v1617
        %v1746 = vmul.f32 %v1618, %v1618
        %v1747 = vmul.f32 %v1619, %v1619
        %v1748 = vmul.f32 %v1620, %v1620
        %v1749 = vmul.f32 %v1621, %v1621
        %v1750 = vmul.f32 %v1622, %v1622
        %v1751 = vmul.f32 %v1623, %v1623
        %v1752 = vmul.f32 %v1624, %v1624
        %v1753 = vmul.f32 %v1625, %v1625
        %v1754 = vmul.f32 %v1626, %v1626
        %v1755 = vmul.f32 %v1627, %v1627
        %v1756 = vmul.f32 %v1628, %v1628
        %v1757 = vmul.f32 %v1629, %v1629
        %v1758 = vmul.f32 %v1630, %v1630
        %v1759 = vmul.f32 %v1631, %v1631
        %v1760 = vmul.f32 %v1632, %v1632
        %v1761 = vmul.f32 %v1633, %v1633
        %v1762 = vmul.f32 %v1634, %v1634
        %v1763 = vmul.f32 %v1635, %v1635
        %v1764 = vmul.f32 %v1636, %v1636
        %v1765 = vmul.f32 %v1637, %v1637
        %v1766 = vmul.f32 %v1638, %v1638
        %v1767 = vmul.f32 %v1639, %v1639
        %v1768 = vmul.f32 %v1640, %v1640
        %v1769 = vmul.f32 %v1641, %v1641
        %v1770 = vmul.f32 %v1642, %v1642
        %v1771 = vmul.f32 %v1643, %v1643
        %v1772 = vmul.f32 %v1644, %v1644
        %v1773 = vmul.f32 %v1645, %v1645
        %v1774 = vmul.f32 %v1646, %v1646
        %v1775 = vmul.f32 %v1647, %v1647
        %v1776 = vmul.f32 %v1648, %v1648
        %v1777 = vmul.f32 %v1649, %v1649
        %v1778 = vsub.f32 %v1650, %v1714
        %v1779 = vsub.f32 %v1651, %v1715
        %v1780 = vsub.f32 %v1652, %v1716
        %v1781 = vsub.f32 %v1653, %v1717
        %v1782 = vsub.f32 %v1654, %v1718
        %v1783 = vsub.f32 %v1655, %v1719
        %v1784 = vsub.f32 %v1656, %v1720
        %v1785 = vsub.f32 %v1657, %v1721
        %v1786 = vsub.f32 %v1658, %v1722
        %v1787 = vsub.f32 %v1659, %v1723
        %v1788 = vsub.f32 %v1660, %v1724
        %v1789 = vsub.f32 %v1661, %v1725
        %v1790 = vsub.f32 %v1662, %v1726
        %v1791 = vsub.f32 %v1663, %v1727
        %v1792 = vsub.f32 %v1664, %v1728
        %v1793 = vsub.f32 %v1665, %v1729
        %v1794 = vsub.f32 %v1666, %v1730
        %v1795 = vsub.f32 %v1667, %v1731
        %v1796 = vsub.f32 %v1668, %v1732
        %v1797 = vsub.f32 %v1669, %v1733
        %v1798 = vsub.f32 %v1670, %v1734
        %v1799 = vsub.f32 %v1671, %v1735
        %v1800 = vsub.f32 %v1672, %v1736
        %v1801 = vsub.f32 %v1673, %v1737
        %v1802 = vsub.f32 %v1674, %v1738
        %v1803 = vsub.f32 %v1675, %v1739
        %v1804 = vsub.f32 %v1676, %v1740
        %v1805 = vsub.f32 %v1677, %v1741
        %v1806 = vsub.f32 %v1678, %v1742
        %v1807 = vsub.f32 %v1679, %v1743
        %v1808 = vsub.f32 %v1680, %v1744
        %v1809 = vsub.f32 %v1681, %v1745
        %v1810 = vsub.f32 %v1682, %v1746
        %v1811 = vsub.f32 %v1683, %v1747
        %v1812 = vsub.f32 %v1684, %v1748
        %v1813 = vsub.f32 %v1685, %v1749
        %v1814 = vsub.f32 %v1686, %v1750
        %v1815 = vsub.f32 %v1687, %v1751
        %v1816 = vsub.f32 %v1688, %v1752
        %v1817 = vsub.f32 %v1689, %v1753
        %v1818 = vsub.f32 %v1690, %v1754
        %v1819 = vsub.f32 %v1691, %v1755
        %v1820 = vsub.f32 %v1692, %v1756
        %v1821 = vsub.f32 %v1693, %v1757
        %v1822 = vsub.f32 %v1694, %v1758
        %v1823 = vsub.f32 %v1695, %v1759
        %v1824 = vsub.f32 %v1696, %v1760
        %v1825 = vsub.f32 %v1697, %v1761
        %v1826 = vsub.f32 %v1698, %v1762
        %v1827 = vsub.f32 %v1699, %v1763
        %v1828 = vsub.f32 %v1700, %v1764
        %v1829 = vsub.f32 %v1701, %v1765
        %v1830 = vsub.f32 %v1702, %v1766
        %v1831 = vsub.f32 %v1703, %v1767
        %v1832 = vsub.f32 %v1704, %v1768
        %v1833 = vsub.f32 %v1705, %v1769
        %v1834 = vsub.f32 %v1706, %v1770
        %v1835 = vsub.f32 %v1707, %v1771
        %v1836 = vsub.f32 %v1708, %v1772
        %v1837 = vsub.f32 %v1709, %v1773
        %v1838 = vsub.f32 %v1710, %v1774
        %v1839 = vsub.f32 %v1711, %v1775
        %v1840 = vsub.f32 %v1712, %v1776
        %v1841 = vsub.f32 %v1713, %v1777
        %v1842 = vmax.f32 %v1778, 0.0
        %v1843 = vmax.f32 %v1779, 0.0
        %v1844 = vmax.f32 %v1780, 0.0
        %v1845 = vmax.f32 %v1781, 0.0
        %v1846 = vmax.f32 %v1782, 0.0
        %v1847 = vmax.f32 %v1783, 0.0
        %v1848 = vmax.f32 %v1784, 0.0
        %v1849 = vmax.f32 %v1785, 0.0
        %v1850 = vmax.f32 %v1786, 0.0
        %v1851 = vmax.f32 %v1787, 0.0
        %v1852 = vmax.f32 %v1788, 0.0
        %v1853 = vmax.f32 %v1789, 0.0
        %v1854 = vmax.f32 %v1790, 0.0
        %v1855 = vmax.f32 %v1791, 0.0
        %v1856 = vmax.f32 %v1792, 0.0
        %v1857 = vmax.f32 %v1793, 0.0
        %v1858 = vmax.f32 %v1794, 0.0
        %v1859 = vmax.f32 %v1795, 0.0
        %v1860 = vmax.f32 %v1796, 0.0
        %v1861 = vmax.f32 %v1797, 0.0
        %v1862 = vmax.f32 %v1798, 0.0
        %v1863 = vmax.f32 %v1799, 0.0
        %v1864 = vmax.f32 %v1800, 0.0
        %v1865 = vmax.f32 %v1801, 0.0
        %v1866 = vmax.f32 %v1802, 0.0
        %v1867 = vmax.f32 %v1803, 0.0
        %v1868 = vmax.f32 %v1804, 0.0
        %v1869 = vmax.f32 %v1805, 0.0
        %v1870 = vmax.f32 %v1806, 0.0
        %v1871 = vmax.f32 %v1807, 0.0
        %v1872 = vmax.f32 %v1808, 0.0
        %v1873 = vmax.f32 %v1809, 0.0
        %v1874 = vmax.f32 %v1810, 0.0
        %v1875 = vmax.f32 %v1811, 0.0
        %v1876 = vmax.f32 %v1812, 0.0
        %v1877 = vmax.f32 %v1813, 0.0
        %v1878 = vmax.f32 %v1814, 0.0
        %v1879 = vmax.f32 %v1815, 0.0
        %v1880 = vmax.f32 %v1816, 0.0
        %v1881 = vmax.f32 %v1817, 0.0
        %v1882 = vmax.f32 %v1818, 0.0
        %v1883 = vmax.f32 %v1819, 0.0
        %v1884 = vmax.f32 %v1820, 0.0
        %v1885 = vmax.f32 %v1821, 0.0
        %v1886 = vmax.f32 %v1822, 0.0
        %v1887 = vmax.f32 %v1823, 0.0
        %v1888 = vmax.f32 %v1824, 0.0
        %v1889 = vmax.f32 %v1825, 0.0
        %v1890 = vmax.f32 %v1826, 0.0
        %v1891 = vmax.f32 %v1827, 0.0
        %v1892 = vmax.f32 %v1828, 0.0
        %v1893 = vmax.f32 %v1829, 0.0
        %v1894 = vmax.f32 %v1830, 0.0
        %v1895 = vmax.f32 %v1831, 0.0
        %v1896 = vmax.f32 %v1832, 0.0
        %v1897 = vmax.f32 %v1833, 0.0
        %v1898 = vmax.f32 %v1834, 0.0
        %v1899 = vmax.f32 %v1835, 0.0
        %v1900 = vmax.f32 %v1836, 0.0
        %v1901 = vmax.f32 %v1837, 0.0
        %v1902 = vmax.f32 %v1838, 0.0
        %v1903 = vmax.f32 %v1839, 0.0
        %v1904 = vmax.f32 %v1840, 0.0
        %v1905 = vmax.f32 %v1841, 0.0
        %v1906 = vsub.f32 %v1202, %v1586
        %v1907 = vsub.f32 %v1203, %v1587
        %v1908 = vsub.f32 %v1204, %v1588
        %v1909 = vsub.f32 %v1205, %v1589
        %v1910 = vsub.f32 %v1206, %v1590
        %v1911 = vsub.f32 %v1207, %v1591
        %v1912 = vsub.f32 %v1208, %v1592
        %v1913 = vsub.f32 %v1209, %v1593
        %v1914 = vsub.f32 %v1210, %v1594
        %v1915 = vsub.f32 %v1211, %v1595
        %v1916 = vsub.f32 %v1212, %v1596
        %v1917 = vsub.f32 %v1213, %v1597
        %v1918 = vsub.f32 %v1214, %v1598
        %v1919 = vsub.f32 %v1215, %v1599
        %v1920 = vsub.f32 %v1216, %v1600
        %v1921 = vsub.f32 %v1217, %v1601
        %v1922 = vsub.f32 %v1218, %v1602
        %v1923 = vsub.f32 %v1219, %v1603
        %v1924 = vsub.f32 %v1220, %v1604
        %v1925 = vsub.f32 %v1221, %v1605
        %v1926 = vsub.f32 %v1222, %v1606
        %v1927 = vsub.f32 %v1223, %v1607
        %v1928 = vsub.f32 %v1224, %v1608
        %v1929 = vsub.f32 %v1225, %v1609
        %v1930 = vsub.f32 %v1226, %v1610
        %v1931 = vsub.f32 %v1227, %v1611
        %v1932 = vsub.f32 %v1228, %v1612
        %v1933 = vsub.f32 %v1229, %v1613
        %v1934 = vsub.f32 %v1230, %v1614
        %v1935 = vsub.f32 %v1231, %v1615
        %v1936 = vsub.f32 %v1232, %v1616
        %v1937 = vsub.f32 %v1233, %v1617
        %v1938 = vsub.f32 %v1234, %v1618
        %v1939 = vsub.f32 %v1235, %v1619
        %v1940 = vsub.f32 %v1236, %v1620
        %v1941 = vsub.f32 %v1237, %v1621
        %v1942 = vsub.f32 %v1238, %v1622
        %v1943 = vsub.f32 %v1239, %v1623
        %v1944 = vsub.f32 %v1240, %v1624
        %v1945 = vsub.f32 %v1241, %v1625
        %v1946 = vsub.f32 %v1242, %v1626
        %v1947 = vsub.f32 %v1243, %v1627
        %v1948 = vsub.f32 %v1244, %v1628
        %v1949 = vsub.f32 %v1245, %v1629
        %v1950 = vsub.f32 %v1246, %v1630
        %v1951 = vsub.f32 %v1247, %v1631
        %v1952 = vsub.f32 %v1248, %v1632
        %v1953 = vsub.f32 %v1249, %v1633
        %v1954 = vsub.f32 %v1250, %v1634
        %v1955 = vsub.f32 %v1251, %v1635
        %v1956 = vsub.f32 %v1252, %v1636
        %v1957 = vsub.f32 %v1253, %v1637
        %v1958 = vsub.f32 %v1254, %v1638
        %v1959 = vsub.f32 %v1255, %v1639
        %v1960 = vsub.f32 %v1256, %v1640
        %v1961 = vsub.f32 %v1257, %v1641
        %v1962 = vsub.f32 %v1258, %v1642
        %v1963 = vsub.f32 %v1259, %v1643
        %v1964 = vsub.f32 %v1260, %v1644
        %v1965 = vsub.f32 %v1261, %v1645
        %v1966 = vsub.f32 %v1262, %v1646
        %v1967 = vsub.f32 %v1263, %v1647
        %v1968 = vsub.f32 %v1264, %v1648
        %v1969 = vsub.f32 %v1265, %v1649
        %v1970 = vadd.f32 %v1842, 1e-05
        %v1971 = vadd.f32 %v1843, 1e-05
        %v1972 = vadd.f32 %v1844, 1e-05
        %v1973 = vadd.f32 %v1845, 1e-05
        %v1974 = vadd.f32 %v1846, 1e-05
        %v1975 = vadd.f32 %v1847, 1e-05
        %v1976 = vadd.f32 %v1848, 1e-05
        %v1977 = vadd.f32 %v1849, 1e-05
        %v1978 = vadd.f32 %v1850, 1e-05
        %v1979 = vadd.f32 %v1851, 1e-05
        %v1980 = vadd.f32 %v1852, 1e-05
        %v1981 = vadd.f32 %v1853, 1e-05
        %v1982 = vadd.f32 %v1854, 1e-05
        %v1983 = vadd.f32 %v1855, 1e-05
        %v1984 = vadd.f32 %v1856, 1e-05
        %v1985 = vadd.f32 %v1857, 1e-05
        %v1986 = vadd.f32 %v1858, 1e-05
        %v1987 = vadd.f32 %v1859, 1e-05
        %v1988 = vadd.f32 %v1860, 1e-05
        %v1989 = vadd.f32 %v1861, 1e-05
        %v1990 = vadd.f32 %v1862, 1e-05
        %v1991 = vadd.f32 %v1863, 1e-05
        %v1992 = vadd.f32 %v1864, 1e-05
        %v1993 = vadd.f32 %v1865, 1e-05
        %v1994 = vadd.f32 %v1866, 1e-05
        %v1995 = vadd.f32 %v1867, 1e-05
        %v1996 = vadd.f32 %v1868, 1e-05
        %v1997 = vadd.f32 %v1869, 1e-05
        %v1998 = vadd.f32 %v1870, 1e-05
        %v1999 = vadd.f32 %v1871, 1e-05
        %v2000 = vadd.f32 %v1872, 1e-05
        %v2001 = vadd.f32 %v1873, 1e-05
        %v2002 = vadd.f32 %v1874, 1e-05
        %v2003 = vadd.f32 %v1875, 1e-05
        %v2004 = vadd.f32 %v1876, 1e-05
        %v2005 = vadd.f32 %v1877, 1e-05
        %v2006 = vadd.f32 %v1878, 1e-05
        %v2007 = vadd.f32 %v1879, 1e-05
        %v2008 = vadd.f32 %v1880, 1e-05
        %v2009 = vadd.f32 %v1881, 1e-05
        %v2010 = vadd.f32 %v1882, 1e-05
        %v2011 = vadd.f32 %v1883, 1e-05
        %v2012 = vadd.f32 %v1884, 1e-05
        %v2013 = vadd.f32 %v1885, 1e-05
        %v2014 = vadd.f32 %v1886, 1e-05
        %v2015 = vadd.f32 %v1887, 1e-05
        %v2016 = vadd.f32 %v1888, 1e-05
        %v2017 = vadd.f32 %v1889, 1e-05
        %v2018 = vadd.f32 %v1890, 1e-05
        %v2019 = vadd.f32 %v1891, 1e-05
        %v2020 = vadd.f32 %v1892, 1e-05
        %v2021 = vadd.f32 %v1893, 1e-05
        %v2022 = vadd.f32 %v1894, 1e-05
        %v2023 = vadd.f32 %v1895, 1e-05
        %v2024 = vadd.f32 %v1896, 1e-05
        %v2025 = vadd.f32 %v1897, 1e-05
        %v2026 = vadd.f32 %v1898, 1e-05
        %v2027 = vadd.f32 %v1899, 1e-05
        %v2028 = vadd.f32 %v1900, 1e-05
        %v2029 = vadd.f32 %v1901, 1e-05
        %v2030 = vadd.f32 %v1902, 1e-05
        %v2031 = vadd.f32 %v1903, 1e-05
        %v2032 = vadd.f32 %v1904, 1e-05
        %v2033 = vadd.f32 %v1905, 1e-05
        %v2034 = vrsqrt.pop %v1970
        %v2035 = vrsqrt.pop %v1971
        %v2036 = vrsqrt.pop %v1972
        %v2037 = vrsqrt.pop %v1973
        %v2038 = vrsqrt.pop %v1974
        %v2039 = vrsqrt.pop %v1975
        %v2040 = vrsqrt.pop %v1976
        %v2041 = vrsqrt.pop %v1977
        %v2042 = vrsqrt.pop %v1978
        %v2043 = vrsqrt.pop %v1979
        %v2044 = vrsqrt.pop %v1980
        %v2045 = vrsqrt.pop %v1981
        %v2046 = vrsqrt.pop %v1982
        %v2047 = vrsqrt.pop %v1983
        %v2048 = vrsqrt.pop %v1984
        %v2049 = vrsqrt.pop %v1985
        %v2050 = vrsqrt.pop %v1986
        %v2051 = vrsqrt.pop %v1987
        %v2052 = vrsqrt.pop %v1988
        %v2053 = vrsqrt.pop %v1989
        %v2054 = vrsqrt.pop %v1990
        %v2055 = vrsqrt.pop %v1991
        %v2056 = vrsqrt.pop %v1992
        %v2057 = vrsqrt.pop %v1993
        %v2058 = vrsqrt.pop %v1994
        %v2059 = vrsqrt.pop %v1995
        %v2060 = vrsqrt.pop %v1996
        %v2061 = vrsqrt.pop %v1997
        %v2062 = vrsqrt.pop %v1998
        %v2063 = vrsqrt.pop %v1999
        %v2064 = vrsqrt.pop %v2000
        %v2065 = vrsqrt.pop %v2001
        %v2066 = vrsqrt.pop %v2002
        %v2067 = vrsqrt.pop %v2003
        %v2068 = vrsqrt.pop %v2004
        %v2069 = vrsqrt.pop %v2005
        %v2070 = vrsqrt.pop %v2006
        %v2071 = vrsqrt.pop %v2007
        %v2072 = vrsqrt.pop %v2008
        %v2073 = vrsqrt.pop %v2009
        %v2074 = vrsqrt.pop %v2010
        %v2075 = vrsqrt.pop %v2011
        %v2076 = vrsqrt.pop %v2012
        %v2077 = vrsqrt.pop %v2013
        %v2078 = vrsqrt.pop %v2014
        %v2079 = vrsqrt.pop %v2015
        %v2080 = vrsqrt.pop %v2016
        %v2081 = vrsqrt.pop %v2017
        %v2082 = vrsqrt.pop %v2018
        %v2083 = vrsqrt.pop %v2019
        %v2084 = vrsqrt.pop %v2020
        %v2085 = vrsqrt.pop %v2021
        %v2086 = vrsqrt.pop %v2022
        %v2087 = vrsqrt.pop %v2023
        %v2088 = vrsqrt.pop %v2024
        %v2089 = vrsqrt.pop %v2025
        %v2090 = vrsqrt.pop %v2026
        %v2091 = vrsqrt.pop %v2027
        %v2092 = vrsqrt.pop %v2028
        %v2093 = vrsqrt.pop %v2029
        %v2094 = vrsqrt.pop %v2030
        %v2095 = vrsqrt.pop %v2031
        %v2096 = vrsqrt.pop %v2032
        %v2097 = vrsqrt.pop %v2033
        %v2098 = vmul.f32 %v1906, %v2034
        %v2099 = vmul.f32 %v1907, %v2035
        %v2100 = vmul.f32 %v1908, %v2036
        %v2101 = vmul.f32 %v1909, %v2037
        %v2102 = vmul.f32 %v1910, %v2038
        %v2103 = vmul.f32 %v1911, %v2039
        %v2104 = vmul.f32 %v1912, %v2040
        %v2105 = vmul.f32 %v1913, %v2041
        %v2106 = vmul.f32 %v1914, %v2042
        %v2107 = vmul.f32 %v1915, %v2043
        %v2108 = vmul.f32 %v1916, %v2044
        %v2109 = vmul.f32 %v1917, %v2045
        %v2110 = vmul.f32 %v1918, %v2046
        %v2111 = vmul.f32 %v1919, %v2047
        %v2112 = vmul.f32 %v1920, %v2048
        %v2113 = vmul.f32 %v1921, %v2049
        %v2114 = vmul.f32 %v1922, %v2050
        %v2115 = vmul.f32 %v1923, %v2051
        %v2116 = vmul.f32 %v1924, %v2052
        %v2117 = vmul.f32 %v1925, %v2053
        %v2118 = vmul.f32 %v1926, %v2054
        %v2119 = vmul.f32 %v1927, %v2055
        %v2120 = vmul.f32 %v1928, %v2056
        %v2121 = vmul.f32 %v1929, %v2057
        %v2122 = vmul.f32 %v1930, %v2058
        %v2123 = vmul.f32 %v1931, %v2059
        %v2124 = vmul.f32 %v1932, %v2060
        %v2125 = vmul.f32 %v1933, %v2061
        %v2126 = vmul.f32 %v1934, %v2062
        %v2127 = vmul.f32 %v1935, %v2063
        %v2128 = vmul.f32 %v1936, %v2064
        %v2129 = vmul.f32 %v1937, %v2065
        %v2130 = vmul.f32 %v1938, %v2066
        %v2131 = vmul.f32 %v1939, %v2067
        %v2132 = vmul.f32 %v1940, %v2068
        %v2133 = vmul.f32 %v1941, %v2069
        %v2134 = vmul.f32 %v1942, %v2070
        %v2135 = vmul.f32 %v1943, %v2071
        %v2136 = vmul.f32 %v1944, %v2072
        %v2137 = vmul.f32 %v1945, %v2073
        %v2138 = vmul.f32 %v1946, %v2074
        %v2139 = vmul.f32 %v1947, %v2075
        %v2140 = vmul.f32 %v1948, %v2076
        %v2141 = vmul.f32 %v1949, %v2077
        %v2142 = vmul.f32 %v1950, %v2078
        %v2143 = vmul.f32 %v1951, %v2079
        %v2144 = vmul.f32 %v1952, %v2080
        %v2145 = vmul.f32 %v1953, %v2081
        %v2146 = vmul.f32 %v1954, %v2082
        %v2147 = vmul.f32 %v1955, %v2083
        %v2148 = vmul.f32 %v1956, %v2084
        %v2149 = vmul.f32 %v1957, %v2085
        %v2150 = vmul.f32 %v1958, %v2086
        %v2151 = vmul.f32 %v1959, %v2087
        %v2152 = vmul.f32 %v1960, %v2088
        %v2153 = vmul.f32 %v1961, %v2089
        %v2154 = vmul.f32 %v1962, %v2090
        %v2155 = vmul.f32 %v1963, %v2091
        %v2156 = vmul.f32 %v1964, %v2092
        %v2157 = vmul.f32 %v1965, %v2093
        %v2158 = vmul.f32 %v1966, %v2094
        %v2159 = vmul.f32 %v1967, %v2095
        %v2160 = vmul.f32 %v1968, %v2096
        %v2161 = vmul.f32 %v1969, %v2097
        %v2162 = vpack.c.bf16 %v2099, %v2098
        %v2163 = vpack.c.bf16 %v2101, %v2100
        %v2164 = vpack.c.bf16 %v2103, %v2102
        %v2165 = vpack.c.bf16 %v2105, %v2104
        %v2166 = vpack.c.bf16 %v2107, %v2106
        %v2167 = vpack.c.bf16 %v2109, %v2108
        %v2168 = vpack.c.bf16 %v2111, %v2110
        %v2169 = vpack.c.bf16 %v2113, %v2112
        %v2170 = vpack.c.bf16 %v2115, %v2114
        %v2171 = vpack.c.bf16 %v2117, %v2116
        %v2172 = vpack.c.bf16 %v2119, %v2118
        %v2173 = vpack.c.bf16 %v2121, %v2120
        %v2174 = vpack.c.bf16 %v2123, %v2122
        %v2175 = vpack.c.bf16 %v2125, %v2124
        %v2176 = vpack.c.bf16 %v2127, %v2126
        %v2177 = vpack.c.bf16 %v2129, %v2128
        %v2178 = vpack.c.bf16 %v2131, %v2130
        %v2179 = vpack.c.bf16 %v2133, %v2132
        %v2180 = vpack.c.bf16 %v2135, %v2134
        %v2181 = vpack.c.bf16 %v2137, %v2136
        %v2182 = vpack.c.bf16 %v2139, %v2138
        %v2183 = vpack.c.bf16 %v2141, %v2140
        %v2184 = vpack.c.bf16 %v2143, %v2142
        %v2185 = vpack.c.bf16 %v2145, %v2144
        %v2186 = vpack.c.bf16 %v2147, %v2146
        %v2187 = vpack.c.bf16 %v2149, %v2148
        %v2188 = vpack.c.bf16 %v2151, %v2150
        %v2189 = vpack.c.bf16 %v2153, %v2152
        %v2190 = vpack.c.bf16 %v2155, %v2154
        %v2191 = vpack.c.bf16 %v2157, %v2156
        %v2192 = vpack.c.bf16 %v2159, %v2158
        %v2193 = vpack.c.bf16 %v2161, %v2160
        %v2194 = vld [vmem:[%s2] sm:$0xf]
        %v2195 = vld [vmem:[%s2 + $0x4] sm:$0xf]
        %v2196 = vld [vmem:[%s2 + $0x8] sm:$0xf]
        %v2197 = vld [vmem:[%s2 + $0xc] sm:$0xf]
        %v2198 = vld [vmem:[%s2 + $0x10] sm:$0xf]
        %v2199 = vld [vmem:[%s2 + $0x14] sm:$0xf]
        %v2200 = vld [vmem:[%s2 + $0x18] sm:$0xf]
        %v2201 = vld [vmem:[%s2 + $0x1c] sm:$0xf]
        %v2202 = vld [vmem:[%s2 + $0x20] sm:$0xf]
        %v2203 = vld [vmem:[%s2 + $0x24] sm:$0xf]
        %v2204 = vld [vmem:[%s2 + $0x28] sm:$0xf]
        %v2205 = vld [vmem:[%s2 + $0x2c] sm:$0xf]
        %v2206 = vld [vmem:[%s2 + $0x30] sm:$0xf]
        %v2207 = vld [vmem:[%s2 + $0x34] sm:$0xf]
        %v2208 = vld [vmem:[%s2 + $0x38] sm:$0xf]
        %v2209 = vld [vmem:[%s2 + $0x3c] sm:$0xf]
        %v2210 = vld [vmem:[%s3] sm:$0x1]
        %v2212 = vlaneseq
        %v2213 = vshrl.u32 %v2212, 7
        %v2214 = vsub.s32 0, %v2213
        %v2215 = vrot.slane %v2210, %v2214
        %v2233 = vunpack.c.l.b16 %v2194
        %v2234 = vunpack.c.l.b16 %v2195
        %v2235 = vunpack.c.l.b16 %v2196
        %v2236 = vunpack.c.l.b16 %v2197
        %v2237 = vunpack.c.l.b16 %v2198
        %v2238 = vunpack.c.l.b16 %v2199
        %v2239 = vunpack.c.l.b16 %v2200
        %v2240 = vunpack.c.l.b16 %v2201
        %v2241 = vunpack.c.l.b16 %v2202
        %v2242 = vunpack.c.l.b16 %v2203
        %v2243 = vunpack.c.l.b16 %v2204
        %v2244 = vunpack.c.l.b16 %v2205
        %v2245 = vunpack.c.l.b16 %v2206
        %v2246 = vunpack.c.l.b16 %v2207
        %v2247 = vunpack.c.l.b16 %v2208
        %v2248 = vunpack.c.l.b16 %v2209
        %v2249 = vpack.c.b16 %v2234, %v2233
        %v2250 = vpack.c.b16 %v2236, %v2235
        %v2251 = vpack.c.b16 %v2238, %v2237
        %v2252 = vpack.c.b16 %v2240, %v2239
        %v2253 = vpack.c.b16 %v2242, %v2241
        %v2254 = vpack.c.b16 %v2244, %v2243
        %v2255 = vpack.c.b16 %v2246, %v2245
        %v2256 = vpack.c.b16 %v2248, %v2247
        %2265 = vmatprep.subr.bf16.mxu0 0
        %2266 = vmatpush1.bf16.msra.mxu0 %v2249
        %2267 = vmatprep.subr.bf16.mxu0 0
        %2268 = vmatpush1.bf16.msra.mxu0 %v2250
        %2269 = vmatprep.subr.bf16.mxu0 0
        %2270 = vmatpush1.bf16.msra.mxu0 %v2251
        %2271 = vmatprep.subr.bf16.mxu0 0
        %2272 = vmatpush1.bf16.msra.mxu0 %v2252
        %2273 = vmatprep.subr.bf16.mxu0 0
        %2274 = vmatpush1.bf16.msra.mxu0 %v2253
        %2275 = vmatprep.subr.bf16.mxu0 0
        %2276 = vmatpush1.bf16.msra.mxu0 %v2254
        %2277 = vmatprep.subr.bf16.mxu0 0
        %2278 = vmatpush1.bf16.msra.mxu0 %v2255
        %2279 = vmatprep.subr.bf16.mxu0 0
        %2280 = vmatpush1.bf16.msra.mxu0 %v2256
        %2281 = vmatprep.subr.bf16.mxu0 0
        %2282 = vmatpush1.bf16.msra.mxu0 0
        %2283 = vmatprep.subr.bf16.mxu0 0
        %2284 = vmatpush1.bf16.msra.mxu0 0
        %2285 = vmatprep.subr.bf16.mxu0 0
        %2286 = vmatpush1.bf16.msra.mxu0 0
        %2287 = vmatprep.subr.bf16.mxu0 0
        %2288 = vmatpush1.bf16.msra.mxu0 0
        %2289 = vmatprep.subr.bf16.mxu0 0
        %2290 = vmatpush1.bf16.msra.mxu0 0
        %2291 = vmatprep.subr.bf16.mxu0 0
        %2292 = vmatpush1.bf16.msra.mxu0 0
        %2293 = vmatprep.subr.bf16.mxu0 0
        %2294 = vmatpush1.bf16.msra.mxu0 0
        %2295 = vmatprep.subr.bf16.mxu0 0
        %2296 = vmatpush1.bf16.msra.mxu0 0
        %2297 = vmatprep.mubr.bf16.mxu0 0
        %2298 = vmatmul.mubr.bf16.gmra.mrb[0].mxu0 %v2162
        %v2299 = vpop.f32.mrb[0].mxu0
        %v2300 = vadd.f32 %v2215, %v2299
        %v2301 = vpop.f32.mrb[0].mxu0
        %v2302 = vpop.f32.mrb[0].mxu0
        %v2303 = vadd.f32 %v2215, %v2302
        %v2304 = vpop.f32.mrb[0].mxu0
        %2305 = vmatprep.mubr.bf16.mxu0 0
        %2306 = vmatmul.mubr.bf16.gmra.mrb[0].mxu0 %v2163
        %v2307 = vpop.f32.mrb[0].mxu0
        %v2308 = vadd.f32 %v2215, %v2307
        %v2309 = vpop.f32.mrb[0].mxu0
        %v2310 = vpop.f32.mrb[0].mxu0
        %v2311 = vadd.f32 %v2215, %v2310
        %v2312 = vpop.f32.mrb[0].mxu0
        %2313 = vmatprep.mubr.bf16.mxu0 0
        %2314 = vmatmul.mubr.bf16.gmra.mrb[0].mxu0 %v2164
        %v2315 = vpop.f32.mrb[0].mxu0
        %v2316 = vadd.f32 %v2215, %v2315
        %v2317 = vpop.f32.mrb[0].mxu0
        %v2318 = vpop.f32.mrb[0].mxu0
        %v2319 = vadd.f32 %v2215, %v2318
        %v2320 = vpop.f32.mrb[0].mxu0
        %2321 = vmatprep.mubr.bf16.mxu0 0
        %2322 = vmatmul.mubr.bf16.gmra.mrb[0].mxu0 %v2165
        %v2323 = vpop.f32.mrb[0].mxu0
        %v2324 = vadd.f32 %v2215, %v2323
        %v2325 = vpop.f32.mrb[0].mxu0
        %v2326 = vpop.f32.mrb[0].mxu0
        %v2327 = vadd.f32 %v2215, %v2326
        %v2328 = vpop.f32.mrb[0].mxu0
        %2329 = vmatprep.mubr.bf16.mxu0 0
        %2330 = vmatmul.mubr.bf16.gmra.mrb[0].mxu0 %v2166
        %v2331 = vpop.f32.mrb[0].mxu0
        %v2332 = vadd.f32 %v2215, %v2331
        %v2333 = vpop.f32.mrb[0].mxu0
        %v2334 = vpop.f32.mrb[0].mxu0
        %v2335 = vadd.f32 %v2215, %v2334
        %v2336 = vpop.f32.mrb[0].mxu0
        %2337 = vmatprep.mubr.bf16.mxu0 0
        %2338 = vmatmul.mubr.bf16.gmra.mrb[0].mxu0 %v2167
        %v2339 = vpop.f32.mrb[0].mxu0
        %v2340 = vadd.f32 %v2215, %v2339
        %v2341 = vpop.f32.mrb[0].mxu0
        %v2342 = vpop.f32.mrb[0].mxu0
        %v2343 = vadd.f32 %v2215, %v2342
        %v2344 = vpop.f32.mrb[0].mxu0
        %2345 = vmatprep.mubr.bf16.mxu0 0
        %2346 = vmatmul.mubr.bf16.gmra.mrb[0].mxu0 %v2168
        %v2347 = vpop.f32.mrb[0].mxu0
        %v2348 = vadd.f32 %v2215, %v2347
        %v2349 = vpop.f32.mrb[0].mxu0
        %v2350 = vpop.f32.mrb[0].mxu0
        %v2351 = vadd.f32 %v2215, %v2350
        %v2352 = vpop.f32.mrb[0].mxu0
        %2353 = vmatprep.mubr.bf16.mxu0 0
        %2354 = vmatmul.mubr.bf16.gmra.mrb[0].mxu0 %v2169
        %v2355 = vpop.f32.mrb[0].mxu0
        %v2356 = vadd.f32 %v2215, %v2355
        %v2357 = vpop.f32.mrb[0].mxu0
        %v2358 = vpop.f32.mrb[0].mxu0
        %v2359 = vadd.f32 %v2215, %v2358
        %v2360 = vpop.f32.mrb[0].mxu0
        %2361 = vmatprep.mubr.bf16.mxu0 0
        %2362 = vmatmul.mubr.bf16.gmra.mrb[0].mxu0 %v2170
        %v2363 = vpop.f32.mrb[0].mxu0
        %v2364 = vadd.f32 %v2215, %v2363
        %v2365 = vpop.f32.mrb[0].mxu0
        %v2366 = vpop.f32.mrb[0].mxu0
        %v2367 = vadd.f32 %v2215, %v2366
        %v2368 = vpop.f32.mrb[0].mxu0
        %2369 = vmatprep.mubr.bf16.mxu0 0
        %2370 = vmatmul.mubr.bf16.gmra.mrb[0].mxu0 %v2171
        %v2371 = vpop.f32.mrb[0].mxu0
        %v2372 = vadd.f32 %v2215, %v2371
        %v2373 = vpop.f32.mrb[0].mxu0
        %v2374 = vpop.f32.mrb[0].mxu0
        %v2375 = vadd.f32 %v2215, %v2374
        %v2376 = vpop.f32.mrb[0].mxu0
        %2377 = vmatprep.mubr.bf16.mxu0 0
        %2378 = vmatmul.mubr.bf16.gmra.mrb[0].mxu0 %v2172
        %v2379 = vpop.f32.mrb[0].mxu0
        %v2380 = vadd.f32 %v2215, %v2379
        %v2381 = vpop.f32.mrb[0].mxu0
        %v2382 = vpop.f32.mrb[0].mxu0
        %v2383 = vadd.f32 %v2215, %v2382
        %v2384 = vpop.f32.mrb[0].mxu0
        %2385 = vmatprep.mubr.bf16.mxu0 0
        %2386 = vmatmul.mubr.bf16.gmra.mrb[0].mxu0 %v2173
        %v2387 = vpop.f32.mrb[0].mxu0
        %v2388 = vadd.f32 %v2215, %v2387
        %v2389 = vpop.f32.mrb[0].mxu0
        %v2390 = vpop.f32.mrb[0].mxu0
        %v2391 = vadd.f32 %v2215, %v2390
        %v2392 = vpop.f32.mrb[0].mxu0
        %2393 = vmatprep.mubr.bf16.mxu0 0
        %2394 = vmatmul.mubr.bf16.gmra.mrb[0].mxu0 %v2174
        %v2395 = vpop.f32.mrb[0].mxu0
        %v2396 = vadd.f32 %v2215, %v2395
        %v2397 = vpop.f32.mrb[0].mxu0
        %v2398 = vpop.f32.mrb[0].mxu0
        %v2399 = vadd.f32 %v2215, %v2398
        %v2400 = vpop.f32.mrb[0].mxu0
        %2401 = vmatprep.mubr.bf16.mxu0 0
        %2402 = vmatmul.mubr.bf16.gmra.mrb[0].mxu0 %v2175
        %v2403 = vpop.f32.mrb[0].mxu0
        %v2404 = vadd.f32 %v2215, %v2403
        %v2405 = vpop.f32.mrb[0].mxu0
        %v2406 = vpop.f32.mrb[0].mxu0
        %v2407 = vadd.f32 %v2215, %v2406
        %v2408 = vpop.f32.mrb[0].mxu0
        %2409 = vmatprep.mubr.bf16.mxu0 0
        %2410 = vmatmul.mubr.bf16.gmra.mrb[0].mxu0 %v2176
        %v2411 = vpop.f32.mrb[0].mxu0
        %v2412 = vadd.f32 %v2215, %v2411
        %v2413 = vpop.f32.mrb[0].mxu0
        %v2414 = vpop.f32.mrb[0].mxu0
        %v2415 = vadd.f32 %v2215, %v2414
        %v2416 = vpop.f32.mrb[0].mxu0
        %2417 = vmatprep.mubr.bf16.mxu0 0
        %2418 = vmatmul.mubr.bf16.gmra.mrb[0].mxu0 %v2177
        %v2419 = vpop.f32.mrb[0].mxu0
        %v2420 = vadd.f32 %v2215, %v2419
        %v2421 = vpop.f32.mrb[0].mxu0
        %v2422 = vpop.f32.mrb[0].mxu0
        %v2423 = vadd.f32 %v2215, %v2422
        %v2424 = vpop.f32.mrb[0].mxu0
        %2425 = vmatprep.mubr.bf16.mxu0 0
        %2426 = vmatmul.mubr.bf16.gmra.mrb[0].mxu0 %v2178
        %v2427 = vpop.f32.mrb[0].mxu0
        %v2428 = vadd.f32 %v2215, %v2427
        %v2429 = vpop.f32.mrb[0].mxu0
        %v2430 = vpop.f32.mrb[0].mxu0
        %v2431 = vadd.f32 %v2215, %v2430
        %v2432 = vpop.f32.mrb[0].mxu0
        %2433 = vmatprep.mubr.bf16.mxu0 0
        %2434 = vmatmul.mubr.bf16.gmra.mrb[0].mxu0 %v2179
        %v2435 = vpop.f32.mrb[0].mxu0
        %v2436 = vadd.f32 %v2215, %v2435
        %v2437 = vpop.f32.mrb[0].mxu0
        %v2438 = vpop.f32.mrb[0].mxu0
        %v2439 = vadd.f32 %v2215, %v2438
        %v2440 = vpop.f32.mrb[0].mxu0
        %2441 = vmatprep.mubr.bf16.mxu0 0
        %2442 = vmatmul.mubr.bf16.gmra.mrb[0].mxu0 %v2180
        %v2443 = vpop.f32.mrb[0].mxu0
        %v2444 = vadd.f32 %v2215, %v2443
        %v2445 = vpop.f32.mrb[0].mxu0
        %v2446 = vpop.f32.mrb[0].mxu0
        %v2447 = vadd.f32 %v2215, %v2446
        %v2448 = vpop.f32.mrb[0].mxu0
        %2449 = vmatprep.mubr.bf16.mxu0 0
        %2450 = vmatmul.mubr.bf16.gmra.mrb[0].mxu0 %v2181
        %v2451 = vpop.f32.mrb[0].mxu0
        %v2452 = vadd.f32 %v2215, %v2451
        %v2453 = vpop.f32.mrb[0].mxu0
        %v2454 = vpop.f32.mrb[0].mxu0
        %v2455 = vadd.f32 %v2215, %v2454
        %v2456 = vpop.f32.mrb[0].mxu0
        %2457 = vmatprep.mubr.bf16.mxu0 0
        %2458 = vmatmul.mubr.bf16.gmra.mrb[0].mxu0 %v2182
        %v2459 = vpop.f32.mrb[0].mxu0
        %v2460 = vadd.f32 %v2215, %v2459
        %v2461 = vpop.f32.mrb[0].mxu0
        %v2462 = vpop.f32.mrb[0].mxu0
        %v2463 = vadd.f32 %v2215, %v2462
        %v2464 = vpop.f32.mrb[0].mxu0
        %2465 = vmatprep.mubr.bf16.mxu0 0
        %2466 = vmatmul.mubr.bf16.gmra.mrb[0].mxu0 %v2183
        %v2467 = vpop.f32.mrb[0].mxu0
        %v2468 = vadd.f32 %v2215, %v2467
        %v2469 = vpop.f32.mrb[0].mxu0
        %v2470 = vpop.f32.mrb[0].mxu0
        %v2471 = vadd.f32 %v2215, %v2470
        %v2472 = vpop.f32.mrb[0].mxu0
        %2473 = vmatprep.mubr.bf16.mxu0 0
        %2474 = vmatmul.mubr.bf16.gmra.mrb[0].mxu0 %v2184
        %v2475 = vpop.f32.mrb[0].mxu0
        %v2476 = vadd.f32 %v2215, %v2475
        %v2477 = vpop.f32.mrb[0].mxu0
        %v2478 = vpop.f32.mrb[0].mxu0
        %v2479 = vadd.f32 %v2215, %v2478
        %v2480 = vpop.f32.mrb[0].mxu0
        %2481 = vmatprep.mubr.bf16.mxu0 0
        %2482 = vmatmul.mubr.bf16.gmra.mrb[0].mxu0 %v2185
        %v2483 = vpop.f32.mrb[0].mxu0
        %v2484 = vadd.f32 %v2215, %v2483
        %v2485 = vpop.f32.mrb[0].mxu0
        %v2486 = vpop.f32.mrb[0].mxu0
        %v2487 = vadd.f32 %v2215, %v2486
        %v2488 = vpop.f32.mrb[0].mxu0
        %2489 = vmatprep.mubr.bf16.mxu0 0
        %2490 = vmatmul.mubr.bf16.gmra.mrb[0].mxu0 %v2186
        %v2491 = vpop.f32.mrb[0].mxu0
        %v2492 = vadd.f32 %v2215, %v2491
        %v2493 = vpop.f32.mrb[0].mxu0
        %v2494 = vpop.f32.mrb[0].mxu0
        %v2495 = vadd.f32 %v2215, %v2494
        %v2496 = vpop.f32.mrb[0].mxu0
        %2497 = vmatprep.mubr.bf16.mxu0 0
        %2498 = vmatmul.mubr.bf16.gmra.mrb[0].mxu0 %v2187
        %v2499 = vpop.f32.mrb[0].mxu0
        %v2500 = vadd.f32 %v2215, %v2499
        %v2501 = vpop.f32.mrb[0].mxu0
        %v2502 = vpop.f32.mrb[0].mxu0
        %v2503 = vadd.f32 %v2215, %v2502
        %v2504 = vpop.f32.mrb[0].mxu0
        %2505 = vmatprep.mubr.bf16.mxu0 0
        %2506 = vmatmul.mubr.bf16.gmra.mrb[0].mxu0 %v2188
        %v2507 = vpop.f32.mrb[0].mxu0
        %v2508 = vadd.f32 %v2215, %v2507
        %v2509 = vpop.f32.mrb[0].mxu0
        %v2510 = vpop.f32.mrb[0].mxu0
        %v2511 = vadd.f32 %v2215, %v2510
        %v2512 = vpop.f32.mrb[0].mxu0
        %2513 = vmatprep.mubr.bf16.mxu0 0
        %2514 = vmatmul.mubr.bf16.gmra.mrb[0].mxu0 %v2189
        %v2515 = vpop.f32.mrb[0].mxu0
        %v2516 = vadd.f32 %v2215, %v2515
        %v2517 = vpop.f32.mrb[0].mxu0
        %v2518 = vpop.f32.mrb[0].mxu0
        %v2519 = vadd.f32 %v2215, %v2518
        %v2520 = vpop.f32.mrb[0].mxu0
        %2521 = vmatprep.mubr.bf16.mxu0 0
        %2522 = vmatmul.mubr.bf16.gmra.mrb[0].mxu0 %v2190
        %v2523 = vpop.f32.mrb[0].mxu0
        %v2524 = vadd.f32 %v2215, %v2523
        %v2525 = vpop.f32.mrb[0].mxu0
        %v2526 = vpop.f32.mrb[0].mxu0
        %v2527 = vadd.f32 %v2215, %v2526
        %v2528 = vpop.f32.mrb[0].mxu0
        %2529 = vmatprep.mubr.bf16.mxu0 0
        %2530 = vmatmul.mubr.bf16.gmra.mrb[0].mxu0 %v2191
        %v2531 = vpop.f32.mrb[0].mxu0
        %v2532 = vadd.f32 %v2215, %v2531
        %v2533 = vpop.f32.mrb[0].mxu0
        %v2534 = vpop.f32.mrb[0].mxu0
        %v2535 = vadd.f32 %v2215, %v2534
        %v2536 = vpop.f32.mrb[0].mxu0
        %2537 = vmatprep.mubr.bf16.mxu0 0
        %2538 = vmatmul.mubr.bf16.gmra.mrb[0].mxu0 %v2192
        %v2539 = vpop.f32.mrb[0].mxu0
        %v2540 = vadd.f32 %v2215, %v2539
        %v2541 = vpop.f32.mrb[0].mxu0
        %v2542 = vpop.f32.mrb[0].mxu0
        %v2543 = vadd.f32 %v2215, %v2542
        %v2544 = vpop.f32.mrb[0].mxu0
        %2545 = vmatprep.mubr.bf16.mxu0 0
        %2546 = vmatmul.mubr.bf16.gmra.mrb[0].mxu0 %v2193
        %v2547 = vpop.f32.mrb[0].mxu0
        %v2548 = vadd.f32 %v2215, %v2547
        %v2549 = vpop.f32.mrb[0].mxu0
        %v2550 = vpop.f32.mrb[0].mxu0
        %v2551 = vadd.f32 %v2215, %v2550
        %v2552 = vpop.f32.mrb[0].mxu0
        %2553 = vdwg.mxu0
        %2554 = vst [vmem:[%s191] sm:$0xff] %v2300
        %2555 = vst [vmem:[%s191 + $0x8] sm:$0xff] %v2303
        %2556 = vst [vmem:[%s191 + $0x10] sm:$0xff] %v2308
        %2557 = vst [vmem:[%s191 + $0x18] sm:$0xff] %v2311
        %2558 = vst [vmem:[%s191 + $0x20] sm:$0xff] %v2316
        %2559 = vst [vmem:[%s191 + $0x28] sm:$0xff] %v2319
        %2560 = vst [vmem:[%s191 + $0x30] sm:$0xff] %v2324
        %2561 = vst [vmem:[%s191 + $0x38] sm:$0xff] %v2327
        %2562 = vst [vmem:[%s191 + $0x40] sm:$0xff] %v2332
        %2563 = vst [vmem:[%s191 + $0x48] sm:$0xff] %v2335
        %2564 = vst [vmem:[%s191 + $0x50] sm:$0xff] %v2340
        %2565 = vst [vmem:[%s191 + $0x58] sm:$0xff] %v2343
        %2566 = vst [vmem:[%s191 + $0x60] sm:$0xff] %v2348
        %2567 = vst [vmem:[%s191 + $0x68] sm:$0xff] %v2351
        %2568 = vst [vmem:[%s191 + $0x70] sm:$0xff] %v2356
        %2569 = vst [vmem:[%s191 + $0x78] sm:$0xff] %v2359
        %2570 = vst [vmem:[%s191 + $0x80] sm:$0xff] %v2364
        %2571 = vst [vmem:[%s191 + $0x88] sm:$0xff] %v2367
        %2572 = vst [vmem:[%s191 + $0x90] sm:$0xff] %v2372
        %2573 = vst [vmem:[%s191 + $0x98] sm:$0xff] %v2375
        %2574 = vst [vmem:[%s191 + $0xa0] sm:$0xff] %v2380
        %2575 = vst [vmem:[%s191 + $0xa8] sm:$0xff] %v2383
        %2576 = vst [vmem:[%s191 + $0xb0] sm:$0xff] %v2388
        %2577 = vst [vmem:[%s191 + $0xb8] sm:$0xff] %v2391
        %2578 = vst [vmem:[%s191 + $0xc0] sm:$0xff] %v2396
        %2579 = vst [vmem:[%s191 + $0xc8] sm:$0xff] %v2399
        %2580 = vst [vmem:[%s191 + $0xd0] sm:$0xff] %v2404
        %2581 = vst [vmem:[%s191 + $0xd8] sm:$0xff] %v2407
        %2582 = vst [vmem:[%s191 + $0xe0] sm:$0xff] %v2412
        %2583 = vst [vmem:[%s191 + $0xe8] sm:$0xff] %v2415
        %2584 = vst [vmem:[%s191 + $0xf0] sm:$0xff] %v2420
        %2585 = vst [vmem:[%s191 + $0xf8] sm:$0xff] %v2423
        %2586 = vst [vmem:[%s191 + $0x100] sm:$0xff] %v2428
        %2587 = vst [vmem:[%s191 + $0x108] sm:$0xff] %v2431
        %2588 = vst [vmem:[%s191 + $0x110] sm:$0xff] %v2436
        %2589 = vst [vmem:[%s191 + $0x118] sm:$0xff] %v2439
        %2590 = vst [vmem:[%s191 + $0x120] sm:$0xff] %v2444
        %2591 = vst [vmem:[%s191 + $0x128] sm:$0xff] %v2447
        %2592 = vst [vmem:[%s191 + $0x130] sm:$0xff] %v2452
        %2593 = vst [vmem:[%s191 + $0x138] sm:$0xff] %v2455
        %2594 = vst [vmem:[%s191 + $0x140] sm:$0xff] %v2460
        %2595 = vst [vmem:[%s191 + $0x148] sm:$0xff] %v2463
        %2596 = vst [vmem:[%s191 + $0x150] sm:$0xff] %v2468
        %2597 = vst [vmem:[%s191 + $0x158] sm:$0xff] %v2471
        %2598 = vst [vmem:[%s191 + $0x160] sm:$0xff] %v2476
        %2599 = vst [vmem:[%s191 + $0x168] sm:$0xff] %v2479
        %2600 = vst [vmem:[%s191 + $0x170] sm:$0xff] %v2484
        %2601 = vst [vmem:[%s191 + $0x178] sm:$0xff] %v2487
        %2602 = vst [vmem:[%s191 + $0x180] sm:$0xff] %v2492
        %2603 = vst [vmem:[%s191 + $0x188] sm:$0xff] %v2495
        %2604 = vst [vmem:[%s191 + $0x190] sm:$0xff] %v2500
        %2605 = vst [vmem:[%s191 + $0x198] sm:$0xff] %v2503
        %2606 = vst [vmem:[%s191 + $0x1a0] sm:$0xff] %v2508
        %2607 = vst [vmem:[%s191 + $0x1a8] sm:$0xff] %v2511
        %2608 = vst [vmem:[%s191 + $0x1b0] sm:$0xff] %v2516
        %2609 = vst [vmem:[%s191 + $0x1b8] sm:$0xff] %v2519
        %2610 = vst [vmem:[%s191 + $0x1c0] sm:$0xff] %v2524
        %2611 = vst [vmem:[%s191 + $0x1c8] sm:$0xff] %v2527
        %2612 = vst [vmem:[%s191 + $0x1d0] sm:$0xff] %v2532
        %2613 = vst [vmem:[%s191 + $0x1d8] sm:$0xff] %v2535
        %2614 = vst [vmem:[%s191 + $0x1e0] sm:$0xff] %v2540
        %2615 = vst [vmem:[%s191 + $0x1e8] sm:$0xff] %v2543
        %2616 = vst [vmem:[%s191 + $0x1f0] sm:$0xff] %v2548
        %2617 = vst [vmem:[%s191 + $0x1f8] sm:$0xff] %v2551
        %s2618 = sand.u32 %s115, 1
        %s2619 = scalar_lea.sflag [#allocation3], %s2618
        %s2620 = sand.u32 %s115, 1
        %s2621 = smul.addr %s2620, 512
        %s2622 = scalar_lea.vmem [#allocation2], %s2621
        // Predicated region
        $region37: #{tpu_custom_call.1} parent=35 // pred_check
          %p2623 = pneg %p125
        $region38: #{tpu_custom_call.1} parent=35 // pred_check_branch
          %2625 = sbr.rel (%p2623) target = $region40
        $region39: #{tpu_custom_call.1} parent=35 // pred_region
          %s2626 = smul.u32 64, %s18
          %s2628 = ssub.s32 8192, 8192
          %2629 = vsyncadd %s2619, %s2628
          %s2630 = smul.addr %s2626, 128
          %s2631 = scalar_lea.hbm %s4, %s2630
          %s2632 = sshll.u32 %s2622, 4
          %s2633 = int_to_ptr.vmem [resolvable:$true] %s2632
          %2638 = dma.vmem_to_hbm [thread:$0]  %s2633, 8192, %s2631, %s2619, 128, 128, 8
        $region40: #{tpu_custom_call.1} parent=35 // pred_fallthru
          _
      $region36: #{tpu_custom_call.1} parent=5 // pred_fallthru
        _
      %p2639 = scmp.le.s32.totalorder 2, %s13
      // Predicated region
      $region41: #{tpu_custom_call.1} parent=5 // pred_check
        %p2640 = pneg %p2639
      $region42: #{tpu_custom_call.1} parent=5 // pred_check_branch
        %2642 = sbr.rel (%p2640) target = $region44
      $region43: #{tpu_custom_call.1} parent=5 // pred_region
        %s2643 = ssub.s32 %s13, 2
        // Predicated region
        $region45: #{tpu_custom_call.1} parent=43 // pred_check
          %p2644 = pneg %p131
        $region46: #{tpu_custom_call.1} parent=43 // pred_check_branch
          %2646 = sbr.rel (%p2644) target = $region48
        $region47: #{tpu_custom_call.1} parent=43 // pred_region
          %s2647 = sand.u32 %s116, 1
          %s2648 = scalar_lea.sflag [#allocation3], %s2647
          %s2649 = sand.u32 %s116, 1
          %s2650 = smul.addr %s2649, 512
          %s2651 = scalar_lea.vmem [#allocation2], %s2650
          %2652 = dma.done %s2648, 8192
        $region48: #{tpu_custom_call.1} parent=43 // pred_fallthru
          _
      $region44: #{tpu_custom_call.1} parent=5 // pred_fallthru
        _
    $region6: #{tpu_custom_call.1} parent=1 // loop_footer
      %s17 = sadd.s32 1, %s13
    $region7: #{tpu_custom_call.1} parent=1 // loop_footer_branch
      %12 = sbr.rel target = $region3
    $region8: #{tpu_custom_call.1} parent=1 // loop_exit
      _
    %2653 = vsyncpa [#allocation3], 1
    %s2654 = scalar_lea.sflag [#allocation3], 1
    %2655 = vsyncpa %s2654, 1

</llo_original>
